<compile_context>
chip_gen: v6e
topology: v6e:2x2x1
jax: 0.10.0
libtpu: 0.0.40
codegen_flags: <defaults>
</compile_context>

<pallas_src>
import functools

import jax
import jax.numpy as jnp
from jax.experimental import pallas as pl
from jax.experimental.pallas import tpu as pltpu


# ----------------------------------------------------------------------------
# In-kernel helpers (pure functions, traced into the kernel)
# ----------------------------------------------------------------------------
def _ln(x, g, b, eps=1e-5):
    mu = jnp.mean(x, axis=-1, keepdims=True)
    var = jnp.mean((x - mu) ** 2, axis=-1, keepdims=True)
    return (x - mu) * jax.lax.rsqrt(var + eps) * g + b


def _gelu(x):
    # tanh-approximate GELU (PyTorch nn.GELU uses exact erf; the tanh form is
    # chosen for robust TPU lowering; difference is ~1e-3).
    c = 0.7978845608028654  # sqrt(2/pi)
    return 0.5 * x * (1.0 + jnp.tanh(c * (x + 0.044715 * x * x * x)))


# ----------------------------------------------------------------------------
# Fused kernel: one MiT stage for one image per grid step.  The (N, C) token
# tile never leaves VMEM/registers between the patch embed, attention block,
# MLP block and final LayerNorm.  Residual adds and GELU are folded in.
# Scratch: zero-padded (Ho+2, Wo+2, hidden) spatial buffer for the DW conv.
# ----------------------------------------------------------------------------
def _mit_stage_kernel(scale, Ho, Wo,
                      cols_ref, pe_w_ref, wq_ref, wk_ref, wv_ref, wo_ref,
                      fc1_w_ref, dw_w_ref, fc2_w_ref, vc_ref, vh_ref,
                      out_ref, pad_ref):
    # Unpack the packed bias/gain vectors (each row is (1, C) / (1, Hd)).
    vc = vc_ref[...]                     # (14, C)
    vh = vh_ref[...]                     # (2, Hd)
    pe_b, pe_g, pe_be = vc[0:1], vc[1:2], vc[2:3]
    ln1_g, ln1_b = vc[3:4], vc[4:5]
    bq, bk, bv, bo = vc[5:6], vc[6:7], vc[7:8], vc[8:9]
    ln2_g, ln2_b = vc[9:10], vc[10:11]
    fc2_b = vc[11:12]
    lnf_g, lnf_b = vc[12:13], vc[13:14]
    fc1_b, dw_b = vh[0:1], vh[1:2]

    cols = cols_ref[0]                                              # (N, Cin*k*k)

    # --- OverlapPatchEmbed: conv-as-matmul + LayerNorm ---
    tok = jnp.dot(cols, pe_w_ref[...],
                  preferred_element_type=jnp.float32) + pe_b
    tok = _ln(tok, pe_g, pe_be)

    # --- Efficient self-attention (sr_ratio=1, 1 head), pre-norm + residual ---
    h = _ln(tok, ln1_g, ln1_b)
    q = jnp.dot(h, wq_ref[...], preferred_element_type=jnp.float32) + bq
    k = jnp.dot(h, wk_ref[...], preferred_element_type=jnp.float32) + bk
    v = jnp.dot(h, wv_ref[...], preferred_element_type=jnp.float32) + bv

    s = jax.lax.dot_general(q, k, (((1,), (1,)), ((), ())),
                            preferred_element_type=jnp.float32) * scale
    s = s - jnp.max(s, axis=-1, keepdims=True)
    p = jnp.exp(s)
    p = p * pl.reciprocal(jnp.sum(p, axis=-1, keepdims=True), approx=True)
    a = jnp.dot(p, v, preferred_element_type=jnp.float32)
    a = jnp.dot(a, wo_ref[...], preferred_element_type=jnp.float32) + bo
    tok = tok + a                                                   # residual 1

    # --- MLP block: LN2 -> fc1 -> DWConv3x3 -> GELU -> fc2 -> residual ---
    h = _ln(tok, ln2_g, ln2_b)
    h = jnp.dot(h, fc1_w_ref[...],
                preferred_element_type=jnp.float32) + fc1_b         # (N, hidden)

    # Zero-padded spatial buffer (channels on lanes) for the depthwise conv.
    pad_ref[...] = jnp.zeros_like(pad_ref)
    for r in range(Ho):
        pad_ref[1 + r, 1:1 + Wo, :] = h[r * Wo:(r + 1) * Wo, :]

    # Depthwise 3x3 conv, accumulated in registers (no staging buffer).
    dw = dw_w_ref[...]                                              # (9, hidden)
    rows = []
    for r in range(Ho):
        acc = None
        for i in range(3):
            for j in range(3):
                w_ij = dw[3 * i + j:3 * i + j + 1, :]               # (1, hidden)
                contrib = pad_ref[r + i, j:j + Wo, :] * w_ij        # (Wo, hidden)
                acc = contrib if acc is None else acc + contrib
        rows.append(acc)
    conv = jnp.concatenate(rows, axis=0) + dw_b                     # (N, hidden)

    # GELU + fc2 + residual + final LayerNorm, fused before the only store.
    h = _gelu(conv)
    h = jnp.dot(h, fc2_w_ref[...],
                preferred_element_type=jnp.float32) + fc2_b
    out_ref[0] = _ln(tok + h, lnf_g, lnf_b)


# ----------------------------------------------------------------------------
# Host-side glue (split/merge, patch extraction, parameter setup)
# ----------------------------------------------------------------------------
def split_images(x):
    # 6-channel input = RGB frame ++ RGB optical flow, split along channels.
    return x[:, :3], x[:, 3:]


def merge_batches(x1, x2):
    assert x1.ndim == 4 and x2.ndim == 4
    return jnp.concatenate((x1, x2), axis=0)


def extract_patches(x_nchw, k, s, p):
    """im2col via one XLA patch-extraction op."""
    patches = jax.lax.conv_general_dilated_patches(
        x_nchw, filter_shape=(k, k), window_strides=(s, s),
        padding=((p, p), (p, p)))                     # (B, Cin*k*k, Ho, Wo)
    B, ckk, Ho, Wo = patches.shape
    cols = patches.transpose(0, 2, 3, 1).reshape(B, Ho * Wo, ckk)
    return cols, Ho, Wo


def _rep_spec(shape):
    """BlockSpec for a grid-invariant (replicated) full-array block."""
    nd = len(shape)
    return pl.BlockSpec(shape, lambda b: (0,) * nd)


def make_params(key, c_in=3, embed=32, mlp_ratio=4, patch_k=7):
    ks = iter(jax.random.split(key, 32))
    n = lambda shape: (0.02 * jax.random.normal(next(ks), shape)).astype(jnp.float32)
    z = lambda shape: jnp.zeros(shape, jnp.float32)
    o = lambda shape: jnp.ones(shape, jnp.float32)
    hidden = embed * mlp_ratio
    return {
        "pe_w": n((c_in * patch_k * patch_k, embed)), "pe_b": z((embed,)),
        "pe_g": o((embed,)), "pe_be": z((embed,)),
        "ln1_g": o((embed,)), "ln1_b": z((embed,)),
        "wq": n((embed, embed)), "bq": z((embed,)),
        "wk": n((embed, embed)), "bk": z((embed,)),
        "wv": n((embed, embed)), "bv": z((embed,)),
        "wo": n((embed, embed)), "bo": z((embed,)),
        "ln2_g": o((embed,)), "ln2_b": z((embed,)),
        "fc1_w": n((embed, hidden)), "fc1_b": z((hidden,)),
        "dw_w": n((3, 3, hidden)), "dw_b": z((hidden,)),
        "fc2_w": n((hidden, embed)), "fc2_b": z((embed,)),
        "lnf_g": o((embed,)), "lnf_b": z((embed,)),
    }


def hfanvos_forward(x, params, embed=32, patch_k=7, patch_s=4, patch_p=3):
    # --- HFANVOS.forward glue ---
    x1, x2 = split_images(x)
    xm = merge_batches(x1, x2)                                     # (2B, 3, H, W)

    # --- MiT stage-1 backbone (single fused Pallas kernel per image) ---
    cols, Ho, Wo = extract_patches(xm, patch_k, patch_s, patch_p)  # (2B, N, Cin*k*k)
    Bm, N, ckk = cols.shape
    C = embed
    Hd = params["fc1_w"].shape[1]
    scale = float(C) ** -0.5

    # Pack all small bias/gain vectors into two arrays (2 DMAs instead of 16).
    vec_c = jnp.stack(
        [params[k] for k in ("pe_b", "pe_g", "pe_be", "ln1_g", "ln1_b",
                             "bq", "bk", "bv", "bo", "ln2_g", "ln2_b",
                             "fc2_b", "lnf_g", "lnf_b")], axis=0)   # (14, C)
    vec_h = jnp.stack([params["fc1_b"], params["dw_b"]], axis=0)    # (2, Hd)
    dw_w = params["dw_w"].reshape(9, Hd)

    out_tok = pl.pallas_call(
        functools.partial(_mit_stage_kernel, scale, Ho, Wo),
        out_shape=jax.ShapeDtypeStruct((Bm, N, C), jnp.float32),
        grid=(Bm,),
        in_specs=[
            pl.BlockSpec((1, N, ckk), lambda b: (b, 0, 0)),
            _rep_spec((ckk, C)),
            _rep_spec((C, C)), _rep_spec((C, C)), _rep_spec((C, C)), _rep_spec((C, C)),
            _rep_spec((C, Hd)),
            _rep_spec((9, Hd)),
            _rep_spec((Hd, C)),
            _rep_spec((14, C)),
            _rep_spec((2, Hd)),
        ],
        out_specs=pl.BlockSpec((1, N, C), lambda b: (b, 0, 0)),
        scratch_shapes=[
            pltpu.VMEM((Ho + 2, Wo + 2, Hd), jnp.float32),   # zero-padded DW-conv buf
        ],
        compiler_params=pltpu.CompilerParams(dimension_semantics=("parallel",)),
    )(cols,
      params["pe_w"],
      params["wq"], params["wk"], params["wv"], params["wo"],
      params["fc1_w"], dw_w, params["fc2_w"],
      vec_c, vec_h)

    # back to NCHW feature map, as MiT stage outputs do
    out = out_tok.reshape(Bm, Ho, Wo, C).transpose(0, 3, 1, 2)
    return out                                                      # (2B, C, H/4, W/4)


if __name__ == "__main__":
    key = jax.random.PRNGKey(0)
    kx, kp = jax.random.split(key)

    B, Cin, H, W = 2, 6, 16, 16          # 6 = RGB frame ++ RGB flow
    x = jax.random.normal(kx, (B, Cin, H, W), dtype=jnp.float32)
    params = make_params(kp)

    fwd = jax.jit(hfanvos_forward)
    out = jax.block_until_ready(fwd(x, params))

    assert out.shape == (2 * B, 32, H // 4, W // 4), out.shape
    assert bool(jnp.all(jnp.isfinite(out)))
    print("KERNEL_OK")
</pallas_src>

<mosaic_0001>
module attributes {stable_mosaic.version = 11 : i64} {
  func.func @_mit_stage_kernel(%arg0: i32, %arg1: memref<1x16x147xf32, #tpu.memory_space<vmem>>, %arg2: memref<147x32xf32, #tpu.memory_space<vmem>>, %arg3: memref<32x32xf32, #tpu.memory_space<vmem>>, %arg4: memref<32x32xf32, #tpu.memory_space<vmem>>, %arg5: memref<32x32xf32, #tpu.memory_space<vmem>>, %arg6: memref<32x32xf32, #tpu.memory_space<vmem>>, %arg7: memref<32x128xf32, #tpu.memory_space<vmem>>, %arg8: memref<9x128xf32, #tpu.memory_space<vmem>>, %arg9: memref<128x32xf32, #tpu.memory_space<vmem>>, %arg10: memref<14x32xf32, #tpu.memory_space<vmem>>, %arg11: memref<2x128xf32, #tpu.memory_space<vmem>>, %arg12: memref<1x16x32xf32, #tpu.memory_space<vmem>>, %arg13: memref<6x6x128xf32, #tpu.memory_space<vmem>>) attributes {dimension_semantics = [#tpu.dimension_semantics<parallel>], iteration_bounds = array<i64: 4>, scalar_prefetch = 0 : i64, scratch_operands = 1 : i64, tpu.core_type = #tpu.core_type<tc>, window_params = [{transform_indices = @transform_0, window_bounds = array<i64: 1, 16, 147>}, {pipeline_mode = #tpu.pipeline_mode<synchronous>, transform_indices = @transform_1, window_bounds = array<i64: 147, 32>}, {pipeline_mode = #tpu.pipeline_mode<synchronous>, transform_indices = @transform_2, window_bounds = array<i64: 32, 32>}, {pipeline_mode = #tpu.pipeline_mode<synchronous>, transform_indices = @transform_3, window_bounds = array<i64: 32, 32>}, {pipeline_mode = #tpu.pipeline_mode<synchronous>, transform_indices = @transform_4, window_bounds = array<i64: 32, 32>}, {pipeline_mode = #tpu.pipeline_mode<synchronous>, transform_indices = @transform_5, window_bounds = array<i64: 32, 32>}, {pipeline_mode = #tpu.pipeline_mode<synchronous>, transform_indices = @transform_6, window_bounds = array<i64: 32, 128>}, {pipeline_mode = #tpu.pipeline_mode<synchronous>, transform_indices = @transform_7, window_bounds = array<i64: 9, 128>}, {pipeline_mode = #tpu.pipeline_mode<synchronous>, transform_indices = @transform_8, window_bounds = array<i64: 128, 32>}, {pipeline_mode = #tpu.pipeline_mode<synchronous>, transform_indices = @transform_9, window_bounds = array<i64: 14, 32>}, {pipeline_mode = #tpu.pipeline_mode<synchronous>, transform_indices = @transform_10, window_bounds = array<i64: 2, 128>}, {transform_indices = @transform_11, window_bounds = array<i64: 1, 16, 32>}]} {
    %c0 = arith.constant 0 : index
    %c0_0 = arith.constant 0 : index
    %0 = vector.load %arg10[%c0, %c0_0] : memref<14x32xf32, #tpu.memory_space<vmem>>, vector<14x32xf32>
    %c0_1 = arith.constant 0 : index
    %c0_2 = arith.constant 0 : index
    %1 = vector.load %arg11[%c0_1, %c0_2] : memref<2x128xf32, #tpu.memory_space<vmem>>, vector<2x128xf32>
    %2 = vector.extract_strided_slice %0 {offsets = [0, 0], sizes = [1, 32], strides = [1, 1]} : vector<14x32xf32> to vector<1x32xf32>
    %3 = vector.extract_strided_slice %0 {offsets = [1, 0], sizes = [1, 32], strides = [1, 1]} : vector<14x32xf32> to vector<1x32xf32>
    %4 = vector.extract_strided_slice %0 {offsets = [2, 0], sizes = [1, 32], strides = [1, 1]} : vector<14x32xf32> to vector<1x32xf32>
    %5 = vector.extract_strided_slice %0 {offsets = [3, 0], sizes = [1, 32], strides = [1, 1]} : vector<14x32xf32> to vector<1x32xf32>
    %6 = vector.extract_strided_slice %0 {offsets = [4, 0], sizes = [1, 32], strides = [1, 1]} : vector<14x32xf32> to vector<1x32xf32>
    %7 = vector.extract_strided_slice %0 {offsets = [5, 0], sizes = [1, 32], strides = [1, 1]} : vector<14x32xf32> to vector<1x32xf32>
    %8 = vector.extract_strided_slice %0 {offsets = [6, 0], sizes = [1, 32], strides = [1, 1]} : vector<14x32xf32> to vector<1x32xf32>
    %9 = vector.extract_strided_slice %0 {offsets = [7, 0], sizes = [1, 32], strides = [1, 1]} : vector<14x32xf32> to vector<1x32xf32>
    %10 = vector.extract_strided_slice %0 {offsets = [8, 0], sizes = [1, 32], strides = [1, 1]} : vector<14x32xf32> to vector<1x32xf32>
    %11 = vector.extract_strided_slice %0 {offsets = [9, 0], sizes = [1, 32], strides = [1, 1]} : vector<14x32xf32> to vector<1x32xf32>
    %12 = vector.extract_strided_slice %0 {offsets = [10, 0], sizes = [1, 32], strides = [1, 1]} : vector<14x32xf32> to vector<1x32xf32>
    %13 = vector.extract_strided_slice %0 {offsets = [11, 0], sizes = [1, 32], strides = [1, 1]} : vector<14x32xf32> to vector<1x32xf32>
    %14 = vector.extract_strided_slice %0 {offsets = [12, 0], sizes = [1, 32], strides = [1, 1]} : vector<14x32xf32> to vector<1x32xf32>
    %15 = vector.extract_strided_slice %0 {offsets = [13, 0], sizes = [1, 32], strides = [1, 1]} : vector<14x32xf32> to vector<1x32xf32>
    %16 = vector.extract_strided_slice %1 {offsets = [0, 0], sizes = [1, 128], strides = [1, 1]} : vector<2x128xf32> to vector<1x128xf32>
    %17 = vector.extract_strided_slice %1 {offsets = [1, 0], sizes = [1, 128], strides = [1, 1]} : vector<2x128xf32> to vector<1x128xf32>
    %c0_3 = arith.constant 0 : index
    %c0_4 = arith.constant 0 : index
    %c0_5 = arith.constant 0 : index
    %18 = vector.load %arg1[%c0_3, %c0_4, %c0_5] : memref<1x16x147xf32, #tpu.memory_space<vmem>>, vector<1x16x147xf32>
    %19 = vector.shape_cast %18 : vector<1x16x147xf32> to vector<16x147xf32>
    %c0_6 = arith.constant 0 : index
    %c0_7 = arith.constant 0 : index
    %20 = vector.load %arg2[%c0_6, %c0_7] : memref<147x32xf32, #tpu.memory_space<vmem>>, vector<147x32xf32>
    %cst = arith.constant dense<0.000000e+00> : vector<16x32xf32>
    %21 = tpu.matmul %19, %20, %cst {dimension_numbers = #tpu.dot_dimension_numbers<[1], [0], [0], [1], [0, 0, 1, 1], [], []>} : vector<16x147xf32>, vector<147x32xf32>, vector<16x32xf32> -> vector<16x32xf32>
    %22 = vector.broadcast %2 : vector<1x32xf32> to vector<16x32xf32>
    %23 = arith.addf %21, %22 : vector<16x32xf32>
    %cst_8 = arith.constant dense<0.000000e+00> : vector<16xf32>
    %24 = vector.multi_reduction <add>, %23, %cst_8 [1] : vector<16x32xf32> to vector<16xf32>
    %25 = vector.shape_cast %24 : vector<16xf32> to vector<16x1xf32>
    %cst_9 = arith.constant 3.200000e+01 : f32
    %26 = vector.broadcast %cst_9 : f32 to vector<16x1xf32>
    %27 = arith.divf %25, %26 : vector<16x1xf32>
    %28 = vector.broadcast %27 : vector<16x1xf32> to vector<16x32xf32>
    %29 = arith.subf %23, %28 : vector<16x32xf32>
    %30 = arith.mulf %29, %29 : vector<16x32xf32>
    %cst_10 = arith.constant dense<0.000000e+00> : vector<16xf32>
    %31 = vector.multi_reduction <add>, %30, %cst_10 [1] : vector<16x32xf32> to vector<16xf32>
    %32 = vector.shape_cast %31 : vector<16xf32> to vector<16x1xf32>
    %cst_11 = arith.constant 3.200000e+01 : f32
    %33 = vector.broadcast %cst_11 : f32 to vector<16x1xf32>
    %34 = arith.divf %32, %33 : vector<16x1xf32>
    %35 = vector.broadcast %27 : vector<16x1xf32> to vector<16x32xf32>
    %36 = arith.subf %23, %35 : vector<16x32xf32>
    %cst_12 = arith.constant 9.99999974E-6 : f32
    %37 = vector.broadcast %cst_12 : f32 to vector<16x1xf32>
    %38 = arith.addf %34, %37 : vector<16x1xf32>
    %39 = math.rsqrt %38 : vector<16x1xf32>
    %40 = vector.broadcast %39 : vector<16x1xf32> to vector<16x32xf32>
    %41 = arith.mulf %36, %40 : vector<16x32xf32>
    %42 = vector.broadcast %3 : vector<1x32xf32> to vector<16x32xf32>
    %43 = arith.mulf %41, %42 : vector<16x32xf32>
    %44 = vector.broadcast %4 : vector<1x32xf32> to vector<16x32xf32>
    %45 = arith.addf %43, %44 : vector<16x32xf32>
    %cst_13 = arith.constant dense<0.000000e+00> : vector<16xf32>
    %46 = vector.multi_reduction <add>, %45, %cst_13 [1] : vector<16x32xf32> to vector<16xf32>
    %47 = vector.shape_cast %46 : vector<16xf32> to vector<16x1xf32>
    %cst_14 = arith.constant 3.200000e+01 : f32
    %48 = vector.broadcast %cst_14 : f32 to vector<16x1xf32>
    %49 = arith.divf %47, %48 : vector<16x1xf32>
    %50 = vector.broadcast %49 : vector<16x1xf32> to vector<16x32xf32>
    %51 = arith.subf %45, %50 : vector<16x32xf32>
    %52 = arith.mulf %51, %51 : vector<16x32xf32>
    %cst_15 = arith.constant dense<0.000000e+00> : vector<16xf32>
    %53 = vector.multi_reduction <add>, %52, %cst_15 [1] : vector<16x32xf32> to vector<16xf32>
    %54 = vector.shape_cast %53 : vector<16xf32> to vector<16x1xf32>
    %cst_16 = arith.constant 3.200000e+01 : f32
    %55 = vector.broadcast %cst_16 : f32 to vector<16x1xf32>
    %56 = arith.divf %54, %55 : vector<16x1xf32>
    %57 = vector.broadcast %49 : vector<16x1xf32> to vector<16x32xf32>
    %58 = arith.subf %45, %57 : vector<16x32xf32>
    %cst_17 = arith.constant 9.99999974E-6 : f32
    %59 = vector.broadcast %cst_17 : f32 to vector<16x1xf32>
    %60 = arith.addf %56, %59 : vector<16x1xf32>
    %61 = math.rsqrt %60 : vector<16x1xf32>
    %62 = vector.broadcast %61 : vector<16x1xf32> to vector<16x32xf32>
    %63 = arith.mulf %58, %62 : vector<16x32xf32>
    %64 = vector.broadcast %5 : vector<1x32xf32> to vector<16x32xf32>
    %65 = arith.mulf %63, %64 : vector<16x32xf32>
    %66 = vector.broadcast %6 : vector<1x32xf32> to vector<16x32xf32>
    %67 = arith.addf %65, %66 : vector<16x32xf32>
    %c0_18 = arith.constant 0 : index
    %c0_19 = arith.constant 0 : index
    %68 = vector.load %arg3[%c0_18, %c0_19] : memref<32x32xf32, #tpu.memory_space<vmem>>, vector<32x32xf32>
    %cst_20 = arith.constant dense<0.000000e+00> : vector<16x32xf32>
    %69 = tpu.matmul %67, %68, %cst_20 {dimension_numbers = #tpu.dot_dimension_numbers<[1], [0], [0], [1], [0, 0, 1, 1], [], []>} : vector<16x32xf32>, vector<32x32xf32>, vector<16x32xf32> -> vector<16x32xf32>
    %70 = vector.broadcast %7 : vector<1x32xf32> to vector<16x32xf32>
    %71 = arith.addf %69, %70 : vector<16x32xf32>
    %c0_21 = arith.constant 0 : index
    %c0_22 = arith.constant 0 : index
    %72 = vector.load %arg4[%c0_21, %c0_22] : memref<32x32xf32, #tpu.memory_space<vmem>>, vector<32x32xf32>
    %cst_23 = arith.constant dense<0.000000e+00> : vector<16x32xf32>
    %73 = tpu.matmul %67, %72, %cst_23 {dimension_numbers = #tpu.dot_dimension_numbers<[1], [0], [0], [1], [0, 0, 1, 1], [], []>} : vector<16x32xf32>, vector<32x32xf32>, vector<16x32xf32> -> vector<16x32xf32>
    %74 = vector.broadcast %8 : vector<1x32xf32> to vector<16x32xf32>
    %75 = arith.addf %73, %74 : vector<16x32xf32>
    %c0_24 = arith.constant 0 : index
    %c0_25 = arith.constant 0 : index
    %76 = vector.load %arg5[%c0_24, %c0_25] : memref<32x32xf32, #tpu.memory_space<vmem>>, vector<32x32xf32>
    %cst_26 = arith.constant dense<0.000000e+00> : vector<16x32xf32>
    %77 = tpu.matmul %67, %76, %cst_26 {dimension_numbers = #tpu.dot_dimension_numbers<[1], [0], [0], [1], [0, 0, 1, 1], [], []>} : vector<16x32xf32>, vector<32x32xf32>, vector<16x32xf32> -> vector<16x32xf32>
    %78 = vector.broadcast %9 : vector<1x32xf32> to vector<16x32xf32>
    %79 = arith.addf %77, %78 : vector<16x32xf32>
    %cst_27 = arith.constant dense<0.000000e+00> : vector<16x16xf32>
    %80 = tpu.matmul %71, %75, %cst_27 {dimension_numbers = #tpu.dot_dimension_numbers<[1], [1], [0], [0], [0, 0, 1, 0], [], []>} : vector<16x32xf32>, vector<16x32xf32>, vector<16x16xf32> -> vector<16x16xf32>
    %cst_28 = arith.constant 0.176776692 : f32
    %81 = vector.broadcast %cst_28 : f32 to vector<16x16xf32>
    %82 = arith.mulf %80, %81 : vector<16x16xf32>
    %cst_29 = arith.constant dense<0xFF800000> : vector<16xf32>
    %83 = vector.multi_reduction <maximumf>, %82, %cst_29 [1] : vector<16x16xf32> to vector<16xf32>
    %84 = vector.shape_cast %83 : vector<16xf32> to vector<16x1xf32>
    %85 = vector.broadcast %84 : vector<16x1xf32> to vector<16x16xf32>
    %86 = arith.subf %82, %85 : vector<16x16xf32>
    %87 = math.exp %86 : vector<16x16xf32>
    %cst_30 = arith.constant dense<0.000000e+00> : vector<16xf32>
    %88 = vector.multi_reduction <add>, %87, %cst_30 [1] : vector<16x16xf32> to vector<16xf32>
    %89 = vector.shape_cast %88 : vector<16xf32> to vector<16x1xf32>
    %90 = tpu.reciprocal %89 {approx = true} : vector<16x1xf32> -> vector<16x1xf32>
    %91 = vector.broadcast %90 : vector<16x1xf32> to vector<16x16xf32>
    %92 = arith.mulf %87, %91 : vector<16x16xf32>
    %cst_31 = arith.constant dense<0.000000e+00> : vector<16x32xf32>
    %93 = tpu.matmul %92, %79, %cst_31 {dimension_numbers = #tpu.dot_dimension_numbers<[1], [0], [0], [1], [0, 0, 1, 1], [], []>} : vector<16x16xf32>, vector<16x32xf32>, vector<16x32xf32> -> vector<16x32xf32>
    %c0_32 = arith.constant 0 : index
    %c0_33 = arith.constant 0 : index
    %94 = vector.load %arg6[%c0_32, %c0_33] : memref<32x32xf32, #tpu.memory_space<vmem>>, vector<32x32xf32>
    %cst_34 = arith.constant dense<0.000000e+00> : vector<16x32xf32>
    %95 = tpu.matmul %93, %94, %cst_34 {dimension_numbers = #tpu.dot_dimension_numbers<[1], [0], [0], [1], [0, 0, 1, 1], [], []>} : vector<16x32xf32>, vector<32x32xf32>, vector<16x32xf32> -> vector<16x32xf32>
    %96 = vector.broadcast %10 : vector<1x32xf32> to vector<16x32xf32>
    %97 = arith.addf %95, %96 : vector<16x32xf32>
    %98 = arith.addf %45, %97 : vector<16x32xf32>
    %cst_35 = arith.constant dense<0.000000e+00> : vector<16xf32>
    %99 = vector.multi_reduction <add>, %98, %cst_35 [1] : vector<16x32xf32> to vector<16xf32>
    %100 = vector.shape_cast %99 : vector<16xf32> to vector<16x1xf32>
    %cst_36 = arith.constant 3.200000e+01 : f32
    %101 = vector.broadcast %cst_36 : f32 to vector<16x1xf32>
    %102 = arith.divf %100, %101 : vector<16x1xf32>
    %103 = vector.broadcast %102 : vector<16x1xf32> to vector<16x32xf32>
    %104 = arith.subf %98, %103 : vector<16x32xf32>
    %105 = arith.mulf %104, %104 : vector<16x32xf32>
    %cst_37 = arith.constant dense<0.000000e+00> : vector<16xf32>
    %106 = vector.multi_reduction <add>, %105, %cst_37 [1] : vector<16x32xf32> to vector<16xf32>
    %107 = vector.shape_cast %106 : vector<16xf32> to vector<16x1xf32>
    %cst_38 = arith.constant 3.200000e+01 : f32
    %108 = vector.broadcast %cst_38 : f32 to vector<16x1xf32>
    %109 = arith.divf %107, %108 : vector<16x1xf32>
    %110 = vector.broadcast %102 : vector<16x1xf32> to vector<16x32xf32>
    %111 = arith.subf %98, %110 : vector<16x32xf32>
    %cst_39 = arith.constant 9.99999974E-6 : f32
    %112 = vector.broadcast %cst_39 : f32 to vector<16x1xf32>
    %113 = arith.addf %109, %112 : vector<16x1xf32>
    %114 = math.rsqrt %113 : vector<16x1xf32>
    %115 = vector.broadcast %114 : vector<16x1xf32> to vector<16x32xf32>
    %116 = arith.mulf %111, %115 : vector<16x32xf32>
    %117 = vector.broadcast %11 : vector<1x32xf32> to vector<16x32xf32>
    %118 = arith.mulf %116, %117 : vector<16x32xf32>
    %119 = vector.broadcast %12 : vector<1x32xf32> to vector<16x32xf32>
    %120 = arith.addf %118, %119 : vector<16x32xf32>
    %c0_40 = arith.constant 0 : index
    %c0_41 = arith.constant 0 : index
    %121 = vector.load %arg7[%c0_40, %c0_41] : memref<32x128xf32, #tpu.memory_space<vmem>>, vector<32x128xf32>
    %cst_42 = arith.constant dense<0.000000e+00> : vector<16x128xf32>
    %122 = tpu.matmul %120, %121, %cst_42 {dimension_numbers = #tpu.dot_dimension_numbers<[1], [0], [0], [1], [0, 0, 1, 1], [], []>} : vector<16x32xf32>, vector<32x128xf32>, vector<16x128xf32> -> vector<16x128xf32>
    %123 = vector.broadcast %16 : vector<1x128xf32> to vector<16x128xf32>
    %124 = arith.addf %122, %123 : vector<16x128xf32>
    %cst_43 = arith.constant 0.000000e+00 : f32
    %125 = vector.broadcast %cst_43 : f32 to vector<6x6x128xf32>
    %c0_44 = arith.constant 0 : index
    %c0_45 = arith.constant 0 : index
    %c0_46 = arith.constant 0 : index
    %126 = vector.load %arg13[%c0_44, %c0_45, %c0_46] : memref<6x6x128xf32, #tpu.memory_space<vmem>>, vector<6x6x128xf32>
    tpu.vector_store %arg13[%c0_44, %c0_45, %c0_46], %125 {strides = array<i32>} : memref<6x6x128xf32, #tpu.memory_space<vmem>>, vector<6x6x128xf32>,
    %127 = vector.extract_strided_slice %124 {offsets = [0, 0], sizes = [4, 128], strides = [1, 1]} : vector<16x128xf32> to vector<4x128xf32>
    %c1 = arith.constant 1 : index
    %c1_47 = arith.constant 1 : index
    %c0_48 = arith.constant 0 : index
    %128 = vector.load %arg13[%c1, %c1_47, %c0_48] : memref<6x6x128xf32, #tpu.memory_space<vmem>>, vector<1x4x128xf32>
    %129 = vector.shape_cast %128 : vector<1x4x128xf32> to vector<4x128xf32>
    %130 = vector.shape_cast %127 : vector<4x128xf32> to vector<1x4x128xf32>
    tpu.vector_store %arg13[%c1, %c1_47, %c0_48], %130 {strides = array<i32>} : memref<6x6x128xf32, #tpu.memory_space<vmem>>, vector<1x4x128xf32>,
    %131 = vector.extract_strided_slice %124 {offsets = [4, 0], sizes = [4, 128], strides = [1, 1]} : vector<16x128xf32> to vector<4x128xf32>
    %c2 = arith.constant 2 : index
    %c1_49 = arith.constant 1 : index
    %c0_50 = arith.constant 0 : index
    %132 = vector.load %arg13[%c2, %c1_49, %c0_50] : memref<6x6x128xf32, #tpu.memory_space<vmem>>, vector<1x4x128xf32>
    %133 = vector.shape_cast %132 : vector<1x4x128xf32> to vector<4x128xf32>
    %134 = vector.shape_cast %131 : vector<4x128xf32> to vector<1x4x128xf32>
    tpu.vector_store %arg13[%c2, %c1_49, %c0_50], %134 {strides = array<i32>} : memref<6x6x128xf32, #tpu.memory_space<vmem>>, vector<1x4x128xf32>,
    %135 = vector.extract_strided_slice %124 {offsets = [8, 0], sizes = [4, 128], strides = [1, 1]} : vector<16x128xf32> to vector<4x128xf32>
    %c3 = arith.constant 3 : index
    %c1_51 = arith.constant 1 : index
    %c0_52 = arith.constant 0 : index
    %136 = vector.load %arg13[%c3, %c1_51, %c0_52] : memref<6x6x128xf32, #tpu.memory_space<vmem>>, vector<1x4x128xf32>
    %137 = vector.shape_cast %136 : vector<1x4x128xf32> to vector<4x128xf32>
    %138 = vector.shape_cast %135 : vector<4x128xf32> to vector<1x4x128xf32>
    tpu.vector_store %arg13[%c3, %c1_51, %c0_52], %138 {strides = array<i32>} : memref<6x6x128xf32, #tpu.memory_space<vmem>>, vector<1x4x128xf32>,
    %139 = vector.extract_strided_slice %124 {offsets = [12, 0], sizes = [4, 128], strides = [1, 1]} : vector<16x128xf32> to vector<4x128xf32>
    %c4 = arith.constant 4 : index
    %c1_53 = arith.constant 1 : index
    %c0_54 = arith.constant 0 : index
    %140 = vector.load %arg13[%c4, %c1_53, %c0_54] : memref<6x6x128xf32, #tpu.memory_space<vmem>>, vector<1x4x128xf32>
    %141 = vector.shape_cast %140 : vector<1x4x128xf32> to vector<4x128xf32>
    %142 = vector.shape_cast %139 : vector<4x128xf32> to vector<1x4x128xf32>
    tpu.vector_store %arg13[%c4, %c1_53, %c0_54], %142 {strides = array<i32>} : memref<6x6x128xf32, #tpu.memory_space<vmem>>, vector<1x4x128xf32>,
    %c0_55 = arith.constant 0 : index
    %c0_56 = arith.constant 0 : index
    %143 = vector.load %arg8[%c0_55, %c0_56] : memref<9x128xf32, #tpu.memory_space<vmem>>, vector<9x128xf32>
    %144 = vector.extract_strided_slice %143 {offsets = [0, 0], sizes = [1, 128], strides = [1, 1]} : vector<9x128xf32> to vector<1x128xf32>
    %c0_57 = arith.constant 0 : index
    %c0_58 = arith.constant 0 : index
    %c0_59 = arith.constant 0 : index
    %145 = vector.load %arg13[%c0_57, %c0_58, %c0_59] : memref<6x6x128xf32, #tpu.memory_space<vmem>>, vector<1x4x128xf32>
    %146 = vector.shape_cast %145 : vector<1x4x128xf32> to vector<4x128xf32>
    %147 = vector.broadcast %144 : vector<1x128xf32> to vector<4x128xf32>
    %148 = arith.mulf %146, %147 : vector<4x128xf32>
    %149 = vector.extract_strided_slice %143 {offsets = [1, 0], sizes = [1, 128], strides = [1, 1]} : vector<9x128xf32> to vector<1x128xf32>
    %c0_60 = arith.constant 0 : index
    %c1_61 = arith.constant 1 : index
    %c0_62 = arith.constant 0 : index
    %150 = vector.load %arg13[%c0_60, %c1_61, %c0_62] : memref<6x6x128xf32, #tpu.memory_space<vmem>>, vector<1x4x128xf32>
    %151 = vector.shape_cast %150 : vector<1x4x128xf32> to vector<4x128xf32>
    %152 = vector.broadcast %149 : vector<1x128xf32> to vector<4x128xf32>
    %153 = arith.mulf %151, %152 : vector<4x128xf32>
    %154 = arith.addf %148, %153 : vector<4x128xf32>
    %155 = vector.extract_strided_slice %143 {offsets = [2, 0], sizes = [1, 128], strides = [1, 1]} : vector<9x128xf32> to vector<1x128xf32>
    %c0_63 = arith.constant 0 : index
    %c2_64 = arith.constant 2 : index
    %c0_65 = arith.constant 0 : index
    %156 = vector.load %arg13[%c0_63, %c2_64, %c0_65] : memref<6x6x128xf32, #tpu.memory_space<vmem>>, vector<1x4x128xf32>
    %157 = vector.shape_cast %156 : vector<1x4x128xf32> to vector<4x128xf32>
    %158 = vector.broadcast %155 : vector<1x128xf32> to vector<4x128xf32>
    %159 = arith.mulf %157, %158 : vector<4x128xf32>
    %160 = arith.addf %154, %159 : vector<4x128xf32>
    %161 = vector.extract_strided_slice %143 {offsets = [3, 0], sizes = [1, 128], strides = [1, 1]} : vector<9x128xf32> to vector<1x128xf32>
    %c1_66 = arith.constant 1 : index
    %c0_67 = arith.constant 0 : index
    %c0_68 = arith.constant 0 : index
    %162 = vector.load %arg13[%c1_66, %c0_67, %c0_68] : memref<6x6x128xf32, #tpu.memory_space<vmem>>, vector<1x4x128xf32>
    %163 = vector.shape_cast %162 : vector<1x4x128xf32> to vector<4x128xf32>
    %164 = vector.broadcast %161 : vector<1x128xf32> to vector<4x128xf32>
    %165 = arith.mulf %163, %164 : vector<4x128xf32>
    %166 = arith.addf %160, %165 : vector<4x128xf32>
    %167 = vector.extract_strided_slice %143 {offsets = [4, 0], sizes = [1, 128], strides = [1, 1]} : vector<9x128xf32> to vector<1x128xf32>
    %c1_69 = arith.constant 1 : index
    %c1_70 = arith.constant 1 : index
    %c0_71 = arith.constant 0 : index
    %168 = vector.load %arg13[%c1_69, %c1_70, %c0_71] : memref<6x6x128xf32, #tpu.memory_space<vmem>>, vector<1x4x128xf32>
    %169 = vector.shape_cast %168 : vector<1x4x128xf32> to vector<4x128xf32>
    %170 = vector.broadcast %167 : vector<1x128xf32> to vector<4x128xf32>
    %171 = arith.mulf %169, %170 : vector<4x128xf32>
    %172 = arith.addf %166, %171 : vector<4x128xf32>
    %173 = vector.extract_strided_slice %143 {offsets = [5, 0], sizes = [1, 128], strides = [1, 1]} : vector<9x128xf32> to vector<1x128xf32>
    %c1_72 = arith.constant 1 : index
    %c2_73 = arith.constant 2 : index
    %c0_74 = arith.constant 0 : index
    %174 = vector.load %arg13[%c1_72, %c2_73, %c0_74] : memref<6x6x128xf32, #tpu.memory_space<vmem>>, vector<1x4x128xf32>
    %175 = vector.shape_cast %174 : vector<1x4x128xf32> to vector<4x128xf32>
    %176 = vector.broadcast %173 : vector<1x128xf32> to vector<4x128xf32>
    %177 = arith.mulf %175, %176 : vector<4x128xf32>
    %178 = arith.addf %172, %177 : vector<4x128xf32>
    %179 = vector.extract_strided_slice %143 {offsets = [6, 0], sizes = [1, 128], strides = [1, 1]} : vector<9x128xf32> to vector<1x128xf32>
    %c2_75 = arith.constant 2 : index
    %c0_76 = arith.constant 0 : index
    %c0_77 = arith.constant 0 : index
    %180 = vector.load %arg13[%c2_75, %c0_76, %c0_77] : memref<6x6x128xf32, #tpu.memory_space<vmem>>, vector<1x4x128xf32>
    %181 = vector.shape_cast %180 : vector<1x4x128xf32> to vector<4x128xf32>
    %182 = vector.broadcast %179 : vector<1x128xf32> to vector<4x128xf32>
    %183 = arith.mulf %181, %182 : vector<4x128xf32>
    %184 = arith.addf %178, %183 : vector<4x128xf32>
    %185 = vector.extract_strided_slice %143 {offsets = [7, 0], sizes = [1, 128], strides = [1, 1]} : vector<9x128xf32> to vector<1x128xf32>
    %c2_78 = arith.constant 2 : index
    %c1_79 = arith.constant 1 : index
    %c0_80 = arith.constant 0 : index
    %186 = vector.load %arg13[%c2_78, %c1_79, %c0_80] : memref<6x6x128xf32, #tpu.memory_space<vmem>>, vector<1x4x128xf32>
    %187 = vector.shape_cast %186 : vector<1x4x128xf32> to vector<4x128xf32>
    %188 = vector.broadcast %185 : vector<1x128xf32> to vector<4x128xf32>
    %189 = arith.mulf %187, %188 : vector<4x128xf32>
    %190 = arith.addf %184, %189 : vector<4x128xf32>
    %191 = vector.extract_strided_slice %143 {offsets = [8, 0], sizes = [1, 128], strides = [1, 1]} : vector<9x128xf32> to vector<1x128xf32>
    %c2_81 = arith.constant 2 : index
    %c2_82 = arith.constant 2 : index
    %c0_83 = arith.constant 0 : index
    %192 = vector.load %arg13[%c2_81, %c2_82, %c0_83] : memref<6x6x128xf32, #tpu.memory_space<vmem>>, vector<1x4x128xf32>
    %193 = vector.shape_cast %192 : vector<1x4x128xf32> to vector<4x128xf32>
    %194 = vector.broadcast %191 : vector<1x128xf32> to vector<4x128xf32>
    %195 = arith.mulf %193, %194 : vector<4x128xf32>
    %196 = arith.addf %190, %195 : vector<4x128xf32>
    %197 = vector.extract_strided_slice %143 {offsets = [0, 0], sizes = [1, 128], strides = [1, 1]} : vector<9x128xf32> to vector<1x128xf32>
    %c1_84 = arith.constant 1 : index
    %c0_85 = arith.constant 0 : index
    %c0_86 = arith.constant 0 : index
    %198 = vector.load %arg13[%c1_84, %c0_85, %c0_86] : memref<6x6x128xf32, #tpu.memory_space<vmem>>, vector<1x4x128xf32>
    %199 = vector.shape_cast %198 : vector<1x4x128xf32> to vector<4x128xf32>
    %200 = vector.broadcast %197 : vector<1x128xf32> to vector<4x128xf32>
    %201 = arith.mulf %199, %200 : vector<4x128xf32>
    %202 = vector.extract_strided_slice %143 {offsets = [1, 0], sizes = [1, 128], strides = [1, 1]} : vector<9x128xf32> to vector<1x128xf32>
    %c1_87 = arith.constant 1 : index
    %c1_88 = arith.constant 1 : index
    %c0_89 = arith.constant 0 : index
    %203 = vector.load %arg13[%c1_87, %c1_88, %c0_89] : memref<6x6x128xf32, #tpu.memory_space<vmem>>, vector<1x4x128xf32>
    %204 = vector.shape_cast %203 : vector<1x4x128xf32> to vector<4x128xf32>
    %205 = vector.broadcast %202 : vector<1x128xf32> to vector<4x128xf32>
    %206 = arith.mulf %204, %205 : vector<4x128xf32>
    %207 = arith.addf %201, %206 : vector<4x128xf32>
    %208 = vector.extract_strided_slice %143 {offsets = [2, 0], sizes = [1, 128], strides = [1, 1]} : vector<9x128xf32> to vector<1x128xf32>
    %c1_90 = arith.constant 1 : index
    %c2_91 = arith.constant 2 : index
    %c0_92 = arith.constant 0 : index
    %209 = vector.load %arg13[%c1_90, %c2_91, %c0_92] : memref<6x6x128xf32, #tpu.memory_space<vmem>>, vector<1x4x128xf32>
    %210 = vector.shape_cast %209 : vector<1x4x128xf32> to vector<4x128xf32>
    %211 = vector.broadcast %208 : vector<1x128xf32> to vector<4x128xf32>
    %212 = arith.mulf %210, %211 : vector<4x128xf32>
    %213 = arith.addf %207, %212 : vector<4x128xf32>
    %214 = vector.extract_strided_slice %143 {offsets = [3, 0], sizes = [1, 128], strides = [1, 1]} : vector<9x128xf32> to vector<1x128xf32>
    %c2_93 = arith.constant 2 : index
    %c0_94 = arith.constant 0 : index
    %c0_95 = arith.constant 0 : index
    %215 = vector.load %arg13[%c2_93, %c0_94, %c0_95] : memref<6x6x128xf32, #tpu.memory_space<vmem>>, vector<1x4x128xf32>
    %216 = vector.shape_cast %215 : vector<1x4x128xf32> to vector<4x128xf32>
    %217 = vector.broadcast %214 : vector<1x128xf32> to vector<4x128xf32>
    %218 = arith.mulf %216, %217 : vector<4x128xf32>
    %219 = arith.addf %213, %218 : vector<4x128xf32>
    %220 = vector.extract_strided_slice %143 {offsets = [4, 0], sizes = [1, 128], strides = [1, 1]} : vector<9x128xf32> to vector<1x128xf32>
    %c2_96 = arith.constant 2 : index
    %c1_97 = arith.constant 1 : index
    %c0_98 = arith.constant 0 : index
    %221 = vector.load %arg13[%c2_96, %c1_97, %c0_98] : memref<6x6x128xf32, #tpu.memory_space<vmem>>, vector<1x4x128xf32>
    %222 = vector.shape_cast %221 : vector<1x4x128xf32> to vector<4x128xf32>
    %223 = vector.broadcast %220 : vector<1x128xf32> to vector<4x128xf32>
    %224 = arith.mulf %222, %223 : vector<4x128xf32>
    %225 = arith.addf %219, %224 : vector<4x128xf32>
    %226 = vector.extract_strided_slice %143 {offsets = [5, 0], sizes = [1, 128], strides = [1, 1]} : vector<9x128xf32> to vector<1x128xf32>
    %c2_99 = arith.constant 2 : index
    %c2_100 = arith.constant 2 : index
    %c0_101 = arith.constant 0 : index
    %227 = vector.load %arg13[%c2_99, %c2_100, %c0_101] : memref<6x6x128xf32, #tpu.memory_space<vmem>>, vector<1x4x128xf32>
    %228 = vector.shape_cast %227 : vector<1x4x128xf32> to vector<4x128xf32>
    %229 = vector.broadcast %226 : vector<1x128xf32> to vector<4x128xf32>
    %230 = arith.mulf %228, %229 : vector<4x128xf32>
    %231 = arith.addf %225, %230 : vector<4x128xf32>
    %232 = vector.extract_strided_slice %143 {offsets = [6, 0], sizes = [1, 128], strides = [1, 1]} : vector<9x128xf32> to vector<1x128xf32>
    %c3_102 = arith.constant 3 : index
    %c0_103 = arith.constant 0 : index
    %c0_104 = arith.constant 0 : index
    %233 = vector.load %arg13[%c3_102, %c0_103, %c0_104] : memref<6x6x128xf32, #tpu.memory_space<vmem>>, vector<1x4x128xf32>
    %234 = vector.shape_cast %233 : vector<1x4x128xf32> to vector<4x128xf32>
    %235 = vector.broadcast %232 : vector<1x128xf32> to vector<4x128xf32>
    %236 = arith.mulf %234, %235 : vector<4x128xf32>
    %237 = arith.addf %231, %236 : vector<4x128xf32>
    %238 = vector.extract_strided_slice %143 {offsets = [7, 0], sizes = [1, 128], strides = [1, 1]} : vector<9x128xf32> to vector<1x128xf32>
    %c3_105 = arith.constant 3 : index
    %c1_106 = arith.constant 1 : index
    %c0_107 = arith.constant 0 : index
    %239 = vector.load %arg13[%c3_105, %c1_106, %c0_107] : memref<6x6x128xf32, #tpu.memory_space<vmem>>, vector<1x4x128xf32>
    %240 = vector.shape_cast %239 : vector<1x4x128xf32> to vector<4x128xf32>
    %241 = vector.broadcast %238 : vector<1x128xf32> to vector<4x128xf32>
    %242 = arith.mulf %240, %241 : vector<4x128xf32>
    %243 = arith.addf %237, %242 : vector<4x128xf32>
    %244 = vector.extract_strided_slice %143 {offsets = [8, 0], sizes = [1, 128], strides = [1, 1]} : vector<9x128xf32> to vector<1x128xf32>
    %c3_108 = arith.constant 3 : index
    %c2_109 = arith.constant 2 : index
    %c0_110 = arith.constant 0 : index
    %245 = vector.load %arg13[%c3_108, %c2_109, %c0_110] : memref<6x6x128xf32, #tpu.memory_space<vmem>>, vector<1x4x128xf32>
    %246 = vector.shape_cast %245 : vector<1x4x128xf32> to vector<4x128xf32>
    %247 = vector.broadcast %244 : vector<1x128xf32> to vector<4x128xf32>
    %248 = arith.mulf %246, %247 : vector<4x128xf32>
    %249 = arith.addf %243, %248 : vector<4x128xf32>
    %250 = vector.extract_strided_slice %143 {offsets = [0, 0], sizes = [1, 128], strides = [1, 1]} : vector<9x128xf32> to vector<1x128xf32>
    %c2_111 = arith.constant 2 : index
    %c0_112 = arith.constant 0 : index
    %c0_113 = arith.constant 0 : index
    %251 = vector.load %arg13[%c2_111, %c0_112, %c0_113] : memref<6x6x128xf32, #tpu.memory_space<vmem>>, vector<1x4x128xf32>
    %252 = vector.shape_cast %251 : vector<1x4x128xf32> to vector<4x128xf32>
    %253 = vector.broadcast %250 : vector<1x128xf32> to vector<4x128xf32>
    %254 = arith.mulf %252, %253 : vector<4x128xf32>
    %255 = vector.extract_strided_slice %143 {offsets = [1, 0], sizes = [1, 128], strides = [1, 1]} : vector<9x128xf32> to vector<1x128xf32>
    %c2_114 = arith.constant 2 : index
    %c1_115 = arith.constant 1 : index
    %c0_116 = arith.constant 0 : index
    %256 = vector.load %arg13[%c2_114, %c1_115, %c0_116] : memref<6x6x128xf32, #tpu.memory_space<vmem>>, vector<1x4x128xf32>
    %257 = vector.shape_cast %256 : vector<1x4x128xf32> to vector<4x128xf32>
    %258 = vector.broadcast %255 : vector<1x128xf32> to vector<4x128xf32>
    %259 = arith.mulf %257, %258 : vector<4x128xf32>
    %260 = arith.addf %254, %259 : vector<4x128xf32>
    %261 = vector.extract_strided_slice %143 {offsets = [2, 0], sizes = [1, 128], strides = [1, 1]} : vector<9x128xf32> to vector<1x128xf32>
    %c2_117 = arith.constant 2 : index
    %c2_118 = arith.constant 2 : index
    %c0_119 = arith.constant 0 : index
    %262 = vector.load %arg13[%c2_117, %c2_118, %c0_119] : memref<6x6x128xf32, #tpu.memory_space<vmem>>, vector<1x4x128xf32>
    %263 = vector.shape_cast %262 : vector<1x4x128xf32> to vector<4x128xf32>
    %264 = vector.broadcast %261 : vector<1x128xf32> to vector<4x128xf32>
    %265 = arith.mulf %263, %264 : vector<4x128xf32>
    %266 = arith.addf %260, %265 : vector<4x128xf32>
    %267 = vector.extract_strided_slice %143 {offsets = [3, 0], sizes = [1, 128], strides = [1, 1]} : vector<9x128xf32> to vector<1x128xf32>
    %c3_120 = arith.constant 3 : index
    %c0_121 = arith.constant 0 : index
    %c0_122 = arith.constant 0 : index
    %268 = vector.load %arg13[%c3_120, %c0_121, %c0_122] : memref<6x6x128xf32, #tpu.memory_space<vmem>>, vector<1x4x128xf32>
    %269 = vector.shape_cast %268 : vector<1x4x128xf32> to vector<4x128xf32>
    %270 = vector.broadcast %267 : vector<1x128xf32> to vector<4x128xf32>
    %271 = arith.mulf %269, %270 : vector<4x128xf32>
    %272 = arith.addf %266, %271 : vector<4x128xf32>
    %273 = vector.extract_strided_slice %143 {offsets = [4, 0], sizes = [1, 128], strides = [1, 1]} : vector<9x128xf32> to vector<1x128xf32>
    %c3_123 = arith.constant 3 : index
    %c1_124 = arith.constant 1 : index
    %c0_125 = arith.constant 0 : index
    %274 = vector.load %arg13[%c3_123, %c1_124, %c0_125] : memref<6x6x128xf32, #tpu.memory_space<vmem>>, vector<1x4x128xf32>
    %275 = vector.shape_cast %274 : vector<1x4x128xf32> to vector<4x128xf32>
    %276 = vector.broadcast %273 : vector<1x128xf32> to vector<4x128xf32>
    %277 = arith.mulf %275, %276 : vector<4x128xf32>
    %278 = arith.addf %272, %277 : vector<4x128xf32>
    %279 = vector.extract_strided_slice %143 {offsets = [5, 0], sizes = [1, 128], strides = [1, 1]} : vector<9x128xf32> to vector<1x128xf32>
    %c3_126 = arith.constant 3 : index
    %c2_127 = arith.constant 2 : index
    %c0_128 = arith.constant 0 : index
    %280 = vector.load %arg13[%c3_126, %c2_127, %c0_128] : memref<6x6x128xf32, #tpu.memory_space<vmem>>, vector<1x4x128xf32>
    %281 = vector.shape_cast %280 : vector<1x4x128xf32> to vector<4x128xf32>
    %282 = vector.broadcast %279 : vector<1x128xf32> to vector<4x128xf32>
    %283 = arith.mulf %281, %282 : vector<4x128xf32>
    %284 = arith.addf %278, %283 : vector<4x128xf32>
    %285 = vector.extract_strided_slice %143 {offsets = [6, 0], sizes = [1, 128], strides = [1, 1]} : vector<9x128xf32> to vector<1x128xf32>
    %c4_129 = arith.constant 4 : index
    %c0_130 = arith.constant 0 : index
    %c0_131 = arith.constant 0 : index
    %286 = vector.load %arg13[%c4_129, %c0_130, %c0_131] : memref<6x6x128xf32, #tpu.memory_space<vmem>>, vector<1x4x128xf32>
    %287 = vector.shape_cast %286 : vector<1x4x128xf32> to vector<4x128xf32>
    %288 = vector.broadcast %285 : vector<1x128xf32> to vector<4x128xf32>
    %289 = arith.mulf %287, %288 : vector<4x128xf32>
    %290 = arith.addf %284, %289 : vector<4x128xf32>
    %291 = vector.extract_strided_slice %143 {offsets = [7, 0], sizes = [1, 128], strides = [1, 1]} : vector<9x128xf32> to vector<1x128xf32>
    %c4_132 = arith.constant 4 : index
    %c1_133 = arith.constant 1 : index
    %c0_134 = arith.constant 0 : index
    %292 = vector.load %arg13[%c4_132, %c1_133, %c0_134] : memref<6x6x128xf32, #tpu.memory_space<vmem>>, vector<1x4x128xf32>
    %293 = vector.shape_cast %292 : vector<1x4x128xf32> to vector<4x128xf32>
    %294 = vector.broadcast %291 : vector<1x128xf32> to vector<4x128xf32>
    %295 = arith.mulf %293, %294 : vector<4x128xf32>
    %296 = arith.addf %290, %295 : vector<4x128xf32>
    %297 = vector.extract_strided_slice %143 {offsets = [8, 0], sizes = [1, 128], strides = [1, 1]} : vector<9x128xf32> to vector<1x128xf32>
    %c4_135 = arith.constant 4 : index
    %c2_136 = arith.constant 2 : index
    %c0_137 = arith.constant 0 : index
    %298 = vector.load %arg13[%c4_135, %c2_136, %c0_137] : memref<6x6x128xf32, #tpu.memory_space<vmem>>, vector<1x4x128xf32>
    %299 = vector.shape_cast %298 : vector<1x4x128xf32> to vector<4x128xf32>
    %300 = vector.broadcast %297 : vector<1x128xf32> to vector<4x128xf32>
    %301 = arith.mulf %299, %300 : vector<4x128xf32>
    %302 = arith.addf %296, %301 : vector<4x128xf32>
    %303 = vector.extract_strided_slice %143 {offsets = [0, 0], sizes = [1, 128], strides = [1, 1]} : vector<9x128xf32> to vector<1x128xf32>
    %c3_138 = arith.constant 3 : index
    %c0_139 = arith.constant 0 : index
    %c0_140 = arith.constant 0 : index
    %304 = vector.load %arg13[%c3_138, %c0_139, %c0_140] : memref<6x6x128xf32, #tpu.memory_space<vmem>>, vector<1x4x128xf32>
    %305 = vector.shape_cast %304 : vector<1x4x128xf32> to vector<4x128xf32>
    %306 = vector.broadcast %303 : vector<1x128xf32> to vector<4x128xf32>
    %307 = arith.mulf %305, %306 : vector<4x128xf32>
    %308 = vector.extract_strided_slice %143 {offsets = [1, 0], sizes = [1, 128], strides = [1, 1]} : vector<9x128xf32> to vector<1x128xf32>
    %c3_141 = arith.constant 3 : index
    %c1_142 = arith.constant 1 : index
    %c0_143 = arith.constant 0 : index
    %309 = vector.load %arg13[%c3_141, %c1_142, %c0_143] : memref<6x6x128xf32, #tpu.memory_space<vmem>>, vector<1x4x128xf32>
    %310 = vector.shape_cast %309 : vector<1x4x128xf32> to vector<4x128xf32>
    %311 = vector.broadcast %308 : vector<1x128xf32> to vector<4x128xf32>
    %312 = arith.mulf %310, %311 : vector<4x128xf32>
    %313 = arith.addf %307, %312 : vector<4x128xf32>
    %314 = vector.extract_strided_slice %143 {offsets = [2, 0], sizes = [1, 128], strides = [1, 1]} : vector<9x128xf32> to vector<1x128xf32>
    %c3_144 = arith.constant 3 : index
    %c2_145 = arith.constant 2 : index
    %c0_146 = arith.constant 0 : index
    %315 = vector.load %arg13[%c3_144, %c2_145, %c0_146] : memref<6x6x128xf32, #tpu.memory_space<vmem>>, vector<1x4x128xf32>
    %316 = vector.shape_cast %315 : vector<1x4x128xf32> to vector<4x128xf32>
    %317 = vector.broadcast %314 : vector<1x128xf32> to vector<4x128xf32>
    %318 = arith.mulf %316, %317 : vector<4x128xf32>
    %319 = arith.addf %313, %318 : vector<4x128xf32>
    %320 = vector.extract_strided_slice %143 {offsets = [3, 0], sizes = [1, 128], strides = [1, 1]} : vector<9x128xf32> to vector<1x128xf32>
    %c4_147 = arith.constant 4 : index
    %c0_148 = arith.constant 0 : index
    %c0_149 = arith.constant 0 : index
    %321 = vector.load %arg13[%c4_147, %c0_148, %c0_149] : memref<6x6x128xf32, #tpu.memory_space<vmem>>, vector<1x4x128xf32>
    %322 = vector.shape_cast %321 : vector<1x4x128xf32> to vector<4x128xf32>
    %323 = vector.broadcast %320 : vector<1x128xf32> to vector<4x128xf32>
    %324 = arith.mulf %322, %323 : vector<4x128xf32>
    %325 = arith.addf %319, %324 : vector<4x128xf32>
    %326 = vector.extract_strided_slice %143 {offsets = [4, 0], sizes = [1, 128], strides = [1, 1]} : vector<9x128xf32> to vector<1x128xf32>
    %c4_150 = arith.constant 4 : index
    %c1_151 = arith.constant 1 : index
    %c0_152 = arith.constant 0 : index
    %327 = vector.load %arg13[%c4_150, %c1_151, %c0_152] : memref<6x6x128xf32, #tpu.memory_space<vmem>>, vector<1x4x128xf32>
    %328 = vector.shape_cast %327 : vector<1x4x128xf32> to vector<4x128xf32>
    %329 = vector.broadcast %326 : vector<1x128xf32> to vector<4x128xf32>
    %330 = arith.mulf %328, %329 : vector<4x128xf32>
    %331 = arith.addf %325, %330 : vector<4x128xf32>
    %332 = vector.extract_strided_slice %143 {offsets = [5, 0], sizes = [1, 128], strides = [1, 1]} : vector<9x128xf32> to vector<1x128xf32>
    %c4_153 = arith.constant 4 : index
    %c2_154 = arith.constant 2 : index
    %c0_155 = arith.constant 0 : index
    %333 = vector.load %arg13[%c4_153, %c2_154, %c0_155] : memref<6x6x128xf32, #tpu.memory_space<vmem>>, vector<1x4x128xf32>
    %334 = vector.shape_cast %333 : vector<1x4x128xf32> to vector<4x128xf32>
    %335 = vector.broadcast %332 : vector<1x128xf32> to vector<4x128xf32>
    %336 = arith.mulf %334, %335 : vector<4x128xf32>
    %337 = arith.addf %331, %336 : vector<4x128xf32>
    %338 = vector.extract_strided_slice %143 {offsets = [6, 0], sizes = [1, 128], strides = [1, 1]} : vector<9x128xf32> to vector<1x128xf32>
    %c5 = arith.constant 5 : index
    %c0_156 = arith.constant 0 : index
    %c0_157 = arith.constant 0 : index
    %339 = vector.load %arg13[%c5, %c0_156, %c0_157] : memref<6x6x128xf32, #tpu.memory_space<vmem>>, vector<1x4x128xf32>
    %340 = vector.shape_cast %339 : vector<1x4x128xf32> to vector<4x128xf32>
    %341 = vector.broadcast %338 : vector<1x128xf32> to vector<4x128xf32>
    %342 = arith.mulf %340, %341 : vector<4x128xf32>
    %343 = arith.addf %337, %342 : vector<4x128xf32>
    %344 = vector.extract_strided_slice %143 {offsets = [7, 0], sizes = [1, 128], strides = [1, 1]} : vector<9x128xf32> to vector<1x128xf32>
    %c5_158 = arith.constant 5 : index
    %c1_159 = arith.constant 1 : index
    %c0_160 = arith.constant 0 : index
    %345 = vector.load %arg13[%c5_158, %c1_159, %c0_160] : memref<6x6x128xf32, #tpu.memory_space<vmem>>, vector<1x4x128xf32>
    %346 = vector.shape_cast %345 : vector<1x4x128xf32> to vector<4x128xf32>
    %347 = vector.broadcast %344 : vector<1x128xf32> to vector<4x128xf32>
    %348 = arith.mulf %346, %347 : vector<4x128xf32>
    %349 = arith.addf %343, %348 : vector<4x128xf32>
    %350 = vector.extract_strided_slice %143 {offsets = [8, 0], sizes = [1, 128], strides = [1, 1]} : vector<9x128xf32> to vector<1x128xf32>
    %c5_161 = arith.constant 5 : index
    %c2_162 = arith.constant 2 : index
    %c0_163 = arith.constant 0 : index
    %351 = vector.load %arg13[%c5_161, %c2_162, %c0_163] : memref<6x6x128xf32, #tpu.memory_space<vmem>>, vector<1x4x128xf32>
    %352 = vector.shape_cast %351 : vector<1x4x128xf32> to vector<4x128xf32>
    %353 = vector.broadcast %350 : vector<1x128xf32> to vector<4x128xf32>
    %354 = arith.mulf %352, %353 : vector<4x128xf32>
    %355 = arith.addf %349, %354 : vector<4x128xf32>
    %356 = tpu.concatenate %196, %249, %302, %355 in 0 : vector<4x128xf32>, vector<4x128xf32>, vector<4x128xf32>, vector<4x128xf32> -> vector<16x128xf32>
    %357 = vector.broadcast %17 : vector<1x128xf32> to vector<16x128xf32>
    %358 = arith.addf %356, %357 : vector<16x128xf32>
    %cst_164 = arith.constant 5.000000e-01 : f32
    %359 = vector.broadcast %cst_164 : f32 to vector<16x128xf32>
    %360 = arith.mulf %359, %358 : vector<16x128xf32>
    %cst_165 = arith.constant 4.471500e-02 : f32
    %361 = vector.broadcast %cst_165 : f32 to vector<16x128xf32>
    %362 = arith.mulf %361, %358 : vector<16x128xf32>
    %363 = arith.mulf %362, %358 : vector<16x128xf32>
    %364 = arith.mulf %363, %358 : vector<16x128xf32>
    %365 = arith.addf %358, %364 : vector<16x128xf32>
    %cst_166 = arith.constant 0.797884583 : f32
    %366 = vector.broadcast %cst_166 : f32 to vector<16x128xf32>
    %367 = arith.mulf %366, %365 : vector<16x128xf32>
    %368 = math.tanh %367 : vector<16x128xf32>
    %cst_167 = arith.constant 1.000000e+00 : f32
    %369 = vector.broadcast %cst_167 : f32 to vector<16x128xf32>
    %370 = arith.addf %369, %368 : vector<16x128xf32>
    %371 = arith.mulf %360, %370 : vector<16x128xf32>
    %c0_168 = arith.constant 0 : index
    %c0_169 = arith.constant 0 : index
    %372 = vector.load %arg9[%c0_168, %c0_169] : memref<128x32xf32, #tpu.memory_space<vmem>>, vector<128x32xf32>
    %cst_170 = arith.constant dense<0.000000e+00> : vector<16x32xf32>
    %373 = tpu.matmul %371, %372, %cst_170 {dimension_numbers = #tpu.dot_dimension_numbers<[1], [0], [0], [1], [0, 0, 1, 1], [], []>} : vector<16x128xf32>, vector<128x32xf32>, vector<16x32xf32> -> vector<16x32xf32>
    %374 = vector.broadcast %13 : vector<1x32xf32> to vector<16x32xf32>
    %375 = arith.addf %373, %374 : vector<16x32xf32>
    %376 = arith.addf %98, %375 : vector<16x32xf32>
    %cst_171 = arith.constant dense<0.000000e+00> : vector<16xf32>
    %377 = vector.multi_reduction <add>, %376, %cst_171 [1] : vector<16x32xf32> to vector<16xf32>
    %378 = vector.shape_cast %377 : vector<16xf32> to vector<16x1xf32>
    %cst_172 = arith.constant 3.200000e+01 : f32
    %379 = vector.broadcast %cst_172 : f32 to vector<16x1xf32>
    %380 = arith.divf %378, %379 : vector<16x1xf32>
    %381 = vector.broadcast %380 : vector<16x1xf32> to vector<16x32xf32>
    %382 = arith.subf %376, %381 : vector<16x32xf32>
    %383 = arith.mulf %382, %382 : vector<16x32xf32>
    %cst_173 = arith.constant dense<0.000000e+00> : vector<16xf32>
    %384 = vector.multi_reduction <add>, %383, %cst_173 [1] : vector<16x32xf32> to vector<16xf32>
    %385 = vector.shape_cast %384 : vector<16xf32> to vector<16x1xf32>
    %cst_174 = arith.constant 3.200000e+01 : f32
    %386 = vector.broadcast %cst_174 : f32 to vector<16x1xf32>
    %387 = arith.divf %385, %386 : vector<16x1xf32>
    %388 = vector.broadcast %380 : vector<16x1xf32> to vector<16x32xf32>
    %389 = arith.subf %376, %388 : vector<16x32xf32>
    %cst_175 = arith.constant 9.99999974E-6 : f32
    %390 = vector.broadcast %cst_175 : f32 to vector<16x1xf32>
    %391 = arith.addf %387, %390 : vector<16x1xf32>
    %392 = math.rsqrt %391 : vector<16x1xf32>
    %393 = vector.broadcast %392 : vector<16x1xf32> to vector<16x32xf32>
    %394 = arith.mulf %389, %393 : vector<16x32xf32>
    %395 = vector.broadcast %14 : vector<1x32xf32> to vector<16x32xf32>
    %396 = arith.mulf %394, %395 : vector<16x32xf32>
    %397 = vector.broadcast %15 : vector<1x32xf32> to vector<16x32xf32>
    %398 = arith.addf %396, %397 : vector<16x32xf32>
    %c0_176 = arith.constant 0 : index
    %c0_177 = arith.constant 0 : index
    %c0_178 = arith.constant 0 : index
    %399 = vector.load %arg12[%c0_176, %c0_177, %c0_178] : memref<1x16x32xf32, #tpu.memory_space<vmem>>, vector<1x16x32xf32>
    %400 = vector.shape_cast %399 : vector<1x16x32xf32> to vector<16x32xf32>
    %401 = vector.shape_cast %398 : vector<16x32xf32> to vector<1x16x32xf32>
    tpu.vector_store %arg12[%c0_176, %c0_177, %c0_178], %401 {strides = array<i32>} : memref<1x16x32xf32, #tpu.memory_space<vmem>>, vector<1x16x32xf32>,
    return
  }
  func.func @transform_0(%arg0: i32) -> (i32, i32, i32) {
    %c0_i32 = arith.constant 0 : i32
    %c0_i32_0 = arith.constant 0 : i32
    %c0_i32_1 = arith.constant 0 : i32
    return %arg0, %c0_i32, %c0_i32_0 : i32, i32, i32
  }
  func.func @transform_1(%arg0: i32) -> (i32, i32) {
    %c0_i32 = arith.constant 0 : i32
    %c0_i32_0 = arith.constant 0 : i32
    %c0_i32_1 = arith.constant 0 : i32
    return %c0_i32, %c0_i32_0 : i32, i32
  }
  func.func @transform_2(%arg0: i32) -> (i32, i32) {
    %c0_i32 = arith.constant 0 : i32
    %c0_i32_0 = arith.constant 0 : i32
    %c0_i32_1 = arith.constant 0 : i32
    return %c0_i32, %c0_i32_0 : i32, i32
  }
  func.func @transform_3(%arg0: i32) -> (i32, i32) {
    %c0_i32 = arith.constant 0 : i32
    %c0_i32_0 = arith.constant 0 : i32
    %c0_i32_1 = arith.constant 0 : i32
    return %c0_i32, %c0_i32_0 : i32, i32
  }
  func.func @transform_4(%arg0: i32) -> (i32, i32) {
    %c0_i32 = arith.constant 0 : i32
    %c0_i32_0 = arith.constant 0 : i32
    %c0_i32_1 = arith.constant 0 : i32
    return %c0_i32, %c0_i32_0 : i32, i32
  }
  func.func @transform_5(%arg0: i32) -> (i32, i32) {
    %c0_i32 = arith.constant 0 : i32
    %c0_i32_0 = arith.constant 0 : i32
    %c0_i32_1 = arith.constant 0 : i32
    return %c0_i32, %c0_i32_0 : i32, i32
  }
  func.func @transform_6(%arg0: i32) -> (i32, i32) {
    %c0_i32 = arith.constant 0 : i32
    %c0_i32_0 = arith.constant 0 : i32
    %c0_i32_1 = arith.constant 0 : i32
    return %c0_i32, %c0_i32_0 : i32, i32
  }
  func.func @transform_7(%arg0: i32) -> (i32, i32) {
    %c0_i32 = arith.constant 0 : i32
    %c0_i32_0 = arith.constant 0 : i32
    %c0_i32_1 = arith.constant 0 : i32
    return %c0_i32, %c0_i32_0 : i32, i32
  }
  func.func @transform_8(%arg0: i32) -> (i32, i32) {
    %c0_i32 = arith.constant 0 : i32
    %c0_i32_0 = arith.constant 0 : i32
    %c0_i32_1 = arith.constant 0 : i32
    return %c0_i32, %c0_i32_0 : i32, i32
  }
  func.func @transform_9(%arg0: i32) -> (i32, i32) {
    %c0_i32 = arith.constant 0 : i32
    %c0_i32_0 = arith.constant 0 : i32
    %c0_i32_1 = arith.constant 0 : i32
    return %c0_i32, %c0_i32_0 : i32, i32
  }
  func.func @transform_10(%arg0: i32) -> (i32, i32) {
    %c0_i32 = arith.constant 0 : i32
    %c0_i32_0 = arith.constant 0 : i32
    %c0_i32_1 = arith.constant 0 : i32
    return %c0_i32, %c0_i32_0 : i32, i32
  }
  func.func @transform_11(%arg0: i32) -> (i32, i32, i32) {
    %c0_i32 = arith.constant 0 : i32
    %c0_i32_0 = arith.constant 0 : i32
    %c0_i32_1 = arith.constant 0 : i32
    return %arg0, %c0_i32, %c0_i32_0 : i32, i32, i32
  }
}

</mosaic_0001>

<llo_original>
// kernel: hfanvos_forward.1
$region0: #{hfanvos_forward.1}
  #allocation0 [shape = 'u32[]', space=smem, size = 0x4, offset = 0x4, fixed_abs, tag = 'smem constant byte address 0x4 - core index']
  #allocation1 [shape = 'u32[144,128]{1,0:T(1,128)}', space=vmem, size = 0x12000, scoped, tag = 'internal scratch']
  #allocation2 [shape = 'f32[6,6,128]{2,1,0:T(8,128)}', space=vmem, size = 0x6000, scoped, tag = 'scratch operand']
  %s0 = inlined_call_operand.vmem [shape: f32[4,16,147], index: 0, kind: input, shape index: {}]
  %s1 = inlined_call_operand.vmem [shape: f32[147,32], index: 1, kind: input, shape index: {}]
  %s2 = inlined_call_operand.vmem [shape: f32[32,32], index: 2, kind: input, shape index: {}]
  %s3 = inlined_call_operand.vmem [shape: f32[32,32], index: 3, kind: input, shape index: {}]
  %s4 = inlined_call_operand.vmem [shape: f32[32,32], index: 4, kind: input, shape index: {}]
  %s5 = inlined_call_operand.vmem [shape: f32[32,32], index: 5, kind: input, shape index: {}]
  %s6 = inlined_call_operand.vmem [shape: f32[32,128], index: 6, kind: input, shape index: {}]
  %s7 = inlined_call_operand.vmem [shape: f32[9,128], index: 7, kind: input, shape index: {}]
  %s8 = inlined_call_operand.vmem [shape: f32[128,32], index: 8, kind: input, shape index: {}]
  %s9 = inlined_call_operand.vmem [shape: f32[14,32], index: 9, kind: input, shape index: {}]
  %s10 = inlined_call_operand.vmem [shape: f32[2,128], index: 10, kind: input, shape index: {}]
  %s11 = inlined_call_operand.hbm [shape: f32[4,16,32], index: 11, kind: output, shape index: {}]
  %s12 = sld [smem:[#allocation0]]
  $region77: #{hfanvos_forward.1} parent=0
    _
  %s14 = ssub.s32 1, %s12
  %s15 = scalar_select 0, %s14, %s12
  $region1: #{hfanvos_forward.1} parent=0
    #allocation3 [shape = 'u8[16384]{0}', space=vmem, size = 0x4000, scoped, tag = 'output window, operand 0']
    #allocation4 [shape = 's32[2]{0}', space=sflag, size = 0x8, scoped, tag = 'scoped memory for hfanvos_forward.1']
    %16 = vsyncpa [#allocation4], 0
    %s17 = scalar_lea.sflag [#allocation4], 1
    %18 = vsyncpa %s17, 0
    loop: start=0, step=1, limit=6
    $region2: #{hfanvos_forward.1} parent=1 // loop_pre_header
      _
    $region3: #{hfanvos_forward.1} parent=1 // loop_header
      %s20 = sphi 0, %s24
      %p21 = scmp.ge.s32.totalorder %s20, 6
      %s30 = sphi 0, %s32
      %s33 = sphi 0, %s30
      %s34 = sphi 0, %s33
      %s50 = sphi 0, %s34
      %s54 = sphi 0, %s54
      %s56 = sphi 0, %s54
      %s57 = sphi 0, %s56
      %s71 = sphi 0, %s57
      %s75 = sphi 0, %s75
      %s77 = sphi 0, %s75
      %s78 = sphi 0, %s77
      %s92 = sphi 0, %s78
      %s96 = sphi 0, %s96
      %s98 = sphi 0, %s96
      %s99 = sphi 0, %s98
      %s113 = sphi 0, %s99
      %s117 = sphi 0, %s117
      %s119 = sphi 0, %s117
      %s120 = sphi 0, %s119
      %s134 = sphi 0, %s120
      %s138 = sphi 0, %s138
      %s140 = sphi 0, %s138
      %s141 = sphi 0, %s140
      %s155 = sphi 0, %s141
      %s159 = sphi 0, %s159
      %s161 = sphi 0, %s159
      %s162 = sphi 0, %s161
      %s176 = sphi 0, %s162
      %s180 = sphi 0, %s180
      %s182 = sphi 0, %s180
      %s183 = sphi 0, %s182
      %s197 = sphi 0, %s183
      %s201 = sphi 0, %s201
      %s203 = sphi 0, %s201
      %s204 = sphi 0, %s203
      %s218 = sphi 0, %s204
      %s222 = sphi 0, %s222
      %s224 = sphi 0, %s222
      %s225 = sphi 0, %s224
      %s239 = sphi 0, %s225
      %s243 = sphi 0, %s243
      %s245 = sphi 0, %s243
      %s246 = sphi 0, %s245
      %s260 = sphi 0, %s246
      %s266 = sphi 0, %s268
      %s269 = sphi 0, %s266
      %s270 = sphi 0, %s269
      %s286 = sphi 0, %s270
    $region4: #{hfanvos_forward.1} parent=1 // loop_header_branch
      %23 = sbr.rel (%p21) target = $region8
    $region5: #{hfanvos_forward.1} parent=1 // loop_body
      %s25 = ssub.s32 %s20, 1
      %s26 = ssub.s32 %s20, 2
      %s27 = sadd.s32 %s20, 1
      %s28 = ssub.s32 %s20, %s27
      %p29 = scmp.eq.s32.totalorder %s28, 0
      %s31 = sadd.s32 %s30, 1
      %s32 = scalar_select %p29, %s30, %s31
      %p35 = pneg %p29
      %p36 = scmp.eq.s32.totalorder %s20, 3
      %p37 = por %p35, %p36
      %p38 = scmp.ne.s32.totalorder %s30, %s33
      %p39 = scmp.eq.s32.totalorder %s20, 0
      %p40 = por %p38, %p39
      %p41 = scmp.ne.s32.totalorder %s30, %s33
      %p42 = scmp.eq.s32.totalorder %s25, 3
      %p43 = por %p41, %p42
      %p44 = scmp.ne.s32.totalorder %s33, %s34
      %p45 = scmp.eq.s32.totalorder %s25, 0
      %p46 = por %p44, %p45
      %p47 = scmp.ne.s32.totalorder %s33, %s34
      %p48 = scmp.eq.s32.totalorder %s26, 3
      %p49 = por %p47, %p48
      %p51 = scmp.ne.s32.totalorder %s34, %s50
      %p52 = scmp.eq.s32.totalorder %s26, 0
      %p53 = por %p51, %p52
      %s55 = sadd.s32 %s54, 1
      %p58 = scmp.eq.s32.totalorder %s20, 3
      %p59 = scmp.ne.s32.totalorder %s54, %s56
      %p60 = scmp.eq.s32.totalorder %s20, 0
      %p61 = por %p59, %p60
      %p62 = scmp.ne.s32.totalorder %s54, %s56
      %p63 = scmp.eq.s32.totalorder %s25, 3
      %p64 = por %p62, %p63
      %p65 = scmp.ne.s32.totalorder %s56, %s57
      %p66 = scmp.eq.s32.totalorder %s25, 0
      %p67 = por %p65, %p66
      %p68 = scmp.ne.s32.totalorder %s56, %s57
      %p69 = scmp.eq.s32.totalorder %s26, 3
      %p70 = por %p68, %p69
      %p72 = scmp.ne.s32.totalorder %s57, %s71
      %p73 = scmp.eq.s32.totalorder %s26, 0
      %p74 = por %p72, %p73
      %s76 = sadd.s32 %s75, 1
      %p79 = scmp.eq.s32.totalorder %s20, 3
      %p80 = scmp.ne.s32.totalorder %s75, %s77
      %p81 = scmp.eq.s32.totalorder %s20, 0
      %p82 = por %p80, %p81
      %p83 = scmp.ne.s32.totalorder %s75, %s77
      %p84 = scmp.eq.s32.totalorder %s25, 3
      %p85 = por %p83, %p84
      %p86 = scmp.ne.s32.totalorder %s77, %s78
      %p87 = scmp.eq.s32.totalorder %s25, 0
      %p88 = por %p86, %p87
      %p89 = scmp.ne.s32.totalorder %s77, %s78
      %p90 = scmp.eq.s32.totalorder %s26, 3
      %p91 = por %p89, %p90
      %p93 = scmp.ne.s32.totalorder %s78, %s92
      %p94 = scmp.eq.s32.totalorder %s26, 0
      %p95 = por %p93, %p94
      %s97 = sadd.s32 %s96, 1
      %p100 = scmp.eq.s32.totalorder %s20, 3
      %p101 = scmp.ne.s32.totalorder %s96, %s98
      %p102 = scmp.eq.s32.totalorder %s20, 0
      %p103 = por %p101, %p102
      %p104 = scmp.ne.s32.totalorder %s96, %s98
      %p105 = scmp.eq.s32.totalorder %s25, 3
      %p106 = por %p104, %p105
      %p107 = scmp.ne.s32.totalorder %s98, %s99
      %p108 = scmp.eq.s32.totalorder %s25, 0
      %p109 = por %p107, %p108
      %p110 = scmp.ne.s32.totalorder %s98, %s99
      %p111 = scmp.eq.s32.totalorder %s26, 3
      %p112 = por %p110, %p111
      %p114 = scmp.ne.s32.totalorder %s99, %s113
      %p115 = scmp.eq.s32.totalorder %s26, 0
      %p116 = por %p114, %p115
      %s118 = sadd.s32 %s117, 1
      %p121 = scmp.eq.s32.totalorder %s20, 3
      %p122 = scmp.ne.s32.totalorder %s117, %s119
      %p123 = scmp.eq.s32.totalorder %s20, 0
      %p124 = por %p122, %p123
      %p125 = scmp.ne.s32.totalorder %s117, %s119
      %p126 = scmp.eq.s32.totalorder %s25, 3
      %p127 = por %p125, %p126
      %p128 = scmp.ne.s32.totalorder %s119, %s120
      %p129 = scmp.eq.s32.totalorder %s25, 0
      %p130 = por %p128, %p129
      %p131 = scmp.ne.s32.totalorder %s119, %s120
      %p132 = scmp.eq.s32.totalorder %s26, 3
      %p133 = por %p131, %p132
      %p135 = scmp.ne.s32.totalorder %s120, %s134
      %p136 = scmp.eq.s32.totalorder %s26, 0
      %p137 = por %p135, %p136
      %s139 = sadd.s32 %s138, 1
      %p142 = scmp.eq.s32.totalorder %s20, 3
      %p143 = scmp.ne.s32.totalorder %s138, %s140
      %p144 = scmp.eq.s32.totalorder %s20, 0
      %p145 = por %p143, %p144
      %p146 = scmp.ne.s32.totalorder %s138, %s140
      %p147 = scmp.eq.s32.totalorder %s25, 3
      %p148 = por %p146, %p147
      %p149 = scmp.ne.s32.totalorder %s140, %s141
      %p150 = scmp.eq.s32.totalorder %s25, 0
      %p151 = por %p149, %p150
      %p152 = scmp.ne.s32.totalorder %s140, %s141
      %p153 = scmp.eq.s32.totalorder %s26, 3
      %p154 = por %p152, %p153
      %p156 = scmp.ne.s32.totalorder %s141, %s155
      %p157 = scmp.eq.s32.totalorder %s26, 0
      %p158 = por %p156, %p157
      %s160 = sadd.s32 %s159, 1
      %p163 = scmp.eq.s32.totalorder %s20, 3
      %p164 = scmp.ne.s32.totalorder %s159, %s161
      %p165 = scmp.eq.s32.totalorder %s20, 0
      %p166 = por %p164, %p165
      %p167 = scmp.ne.s32.totalorder %s159, %s161
      %p168 = scmp.eq.s32.totalorder %s25, 3
      %p169 = por %p167, %p168
      %p170 = scmp.ne.s32.totalorder %s161, %s162
      %p171 = scmp.eq.s32.totalorder %s25, 0
      %p172 = por %p170, %p171
      %p173 = scmp.ne.s32.totalorder %s161, %s162
      %p174 = scmp.eq.s32.totalorder %s26, 3
      %p175 = por %p173, %p174
      %p177 = scmp.ne.s32.totalorder %s162, %s176
      %p178 = scmp.eq.s32.totalorder %s26, 0
      %p179 = por %p177, %p178
      %s181 = sadd.s32 %s180, 1
      %p184 = scmp.eq.s32.totalorder %s20, 3
      %p185 = scmp.ne.s32.totalorder %s180, %s182
      %p186 = scmp.eq.s32.totalorder %s20, 0
      %p187 = por %p185, %p186
      %p188 = scmp.ne.s32.totalorder %s180, %s182
      %p189 = scmp.eq.s32.totalorder %s25, 3
      %p190 = por %p188, %p189
      %p191 = scmp.ne.s32.totalorder %s182, %s183
      %p192 = scmp.eq.s32.totalorder %s25, 0
      %p193 = por %p191, %p192
      %p194 = scmp.ne.s32.totalorder %s182, %s183
      %p195 = scmp.eq.s32.totalorder %s26, 3
      %p196 = por %p194, %p195
      %p198 = scmp.ne.s32.totalorder %s183, %s197
      %p199 = scmp.eq.s32.totalorder %s26, 0
      %p200 = por %p198, %p199
      %s202 = sadd.s32 %s201, 1
      %p205 = scmp.eq.s32.totalorder %s20, 3
      %p206 = scmp.ne.s32.totalorder %s201, %s203
      %p207 = scmp.eq.s32.totalorder %s20, 0
      %p208 = por %p206, %p207
      %p209 = scmp.ne.s32.totalorder %s201, %s203
      %p210 = scmp.eq.s32.totalorder %s25, 3
      %p211 = por %p209, %p210
      %p212 = scmp.ne.s32.totalorder %s203, %s204
      %p213 = scmp.eq.s32.totalorder %s25, 0
      %p214 = por %p212, %p213
      %p215 = scmp.ne.s32.totalorder %s203, %s204
      %p216 = scmp.eq.s32.totalorder %s26, 3
      %p217 = por %p215, %p216
      %p219 = scmp.ne.s32.totalorder %s204, %s218
      %p220 = scmp.eq.s32.totalorder %s26, 0
      %p221 = por %p219, %p220
      %s223 = sadd.s32 %s222, 1
      %p226 = scmp.eq.s32.totalorder %s20, 3
      %p227 = scmp.ne.s32.totalorder %s222, %s224
      %p228 = scmp.eq.s32.totalorder %s20, 0
      %p229 = por %p227, %p228
      %p230 = scmp.ne.s32.totalorder %s222, %s224
      %p231 = scmp.eq.s32.totalorder %s25, 3
      %p232 = por %p230, %p231
      %p233 = scmp.ne.s32.totalorder %s224, %s225
      %p234 = scmp.eq.s32.totalorder %s25, 0
      %p235 = por %p233, %p234
      %p236 = scmp.ne.s32.totalorder %s224, %s225
      %p237 = scmp.eq.s32.totalorder %s26, 3
      %p238 = por %p236, %p237
      %p240 = scmp.ne.s32.totalorder %s225, %s239
      %p241 = scmp.eq.s32.totalorder %s26, 0
      %p242 = por %p240, %p241
      %s244 = sadd.s32 %s243, 1
      %p247 = scmp.eq.s32.totalorder %s20, 3
      %p248 = scmp.ne.s32.totalorder %s243, %s245
      %p249 = scmp.eq.s32.totalorder %s20, 0
      %p250 = por %p248, %p249
      %p251 = scmp.ne.s32.totalorder %s243, %s245
      %p252 = scmp.eq.s32.totalorder %s25, 3
      %p253 = por %p251, %p252
      %p254 = scmp.ne.s32.totalorder %s245, %s246
      %p255 = scmp.eq.s32.totalorder %s25, 0
      %p256 = por %p254, %p255
      %p257 = scmp.ne.s32.totalorder %s245, %s246
      %p258 = scmp.eq.s32.totalorder %s26, 3
      %p259 = por %p257, %p258
      %p261 = scmp.ne.s32.totalorder %s246, %s260
      %p262 = scmp.eq.s32.totalorder %s26, 0
      %p263 = por %p261, %p262
      %s264 = ssub.s32 %s20, %s27
      %p265 = scmp.eq.s32.totalorder %s264, 0
      %s267 = sadd.s32 %s266, 1
      %s268 = scalar_select %p265, %s266, %s267
      %p271 = pneg %p265
      %p272 = scmp.eq.s32.totalorder %s20, 3
      %p273 = por %p271, %p272
      %p274 = scmp.ne.s32.totalorder %s266, %s269
      %p275 = scmp.eq.s32.totalorder %s20, 0
      %p276 = por %p274, %p275
      %p277 = scmp.ne.s32.totalorder %s266, %s269
      %p278 = scmp.eq.s32.totalorder %s25, 3
      %p279 = por %p277, %p278
      %p280 = scmp.ne.s32.totalorder %s269, %s270
      %p281 = scmp.eq.s32.totalorder %s25, 0
      %p282 = por %p280, %p281
      %p283 = scmp.ne.s32.totalorder %s269, %s270
      %p284 = scmp.eq.s32.totalorder %s26, 3
      %p285 = por %p283, %p284
      %p287 = scmp.ne.s32.totalorder %s270, %s286
      %p288 = scmp.eq.s32.totalorder %s26, 0
      %p289 = por %p287, %p288
      %p290 = scmp.le.s32.totalorder 1, %s20
      %p291 = scmp.lt.s32.totalorder %s20, 5
      %p292 = pnand %p290, %p291
      %p293 = pneg %p292
      // Predicated region
      $region9: #{hfanvos_forward.1} parent=5 // pred_check
        _
      $region10: #{hfanvos_forward.1} parent=5 // pred_check_branch
        %295 = sbr.rel (%p292) target = $region12
      $region11: #{hfanvos_forward.1} parent=5 // pred_region
        %s296 = ssub.s32 %s20, 1
        // Predicated region
        $region13: #{hfanvos_forward.1} parent=11 // pred_check
          %p297 = pneg %p67
        $region14: #{hfanvos_forward.1} parent=11 // pred_check_branch
          %299 = sbr.rel (%p297) target = $region16
        $region15: #{hfanvos_forward.1} parent=11 // pred_region
          _
        $region16: #{hfanvos_forward.1} parent=11 // pred_fallthru
          _
        // Predicated region
        $region17: #{hfanvos_forward.1} parent=11 // pred_check
          %p300 = pneg %p88
        $region18: #{hfanvos_forward.1} parent=11 // pred_check_branch
          %302 = sbr.rel (%p300) target = $region20
        $region19: #{hfanvos_forward.1} parent=11 // pred_region
          _
        $region20: #{hfanvos_forward.1} parent=11 // pred_fallthru
          _
        // Predicated region
        $region21: #{hfanvos_forward.1} parent=11 // pred_check
          %p303 = pneg %p109
        $region22: #{hfanvos_forward.1} parent=11 // pred_check_branch
          %305 = sbr.rel (%p303) target = $region24
        $region23: #{hfanvos_forward.1} parent=11 // pred_region
          _
        $region24: #{hfanvos_forward.1} parent=11 // pred_fallthru
          _
        // Predicated region
        $region25: #{hfanvos_forward.1} parent=11 // pred_check
          %p306 = pneg %p130
        $region26: #{hfanvos_forward.1} parent=11 // pred_check_branch
          %308 = sbr.rel (%p306) target = $region28
        $region27: #{hfanvos_forward.1} parent=11 // pred_region
          _
        $region28: #{hfanvos_forward.1} parent=11 // pred_fallthru
          _
        // Predicated region
        $region29: #{hfanvos_forward.1} parent=11 // pred_check
          %p309 = pneg %p151
        $region30: #{hfanvos_forward.1} parent=11 // pred_check_branch
          %311 = sbr.rel (%p309) target = $region32
        $region31: #{hfanvos_forward.1} parent=11 // pred_region
          _
        $region32: #{hfanvos_forward.1} parent=11 // pred_fallthru
          _
        // Predicated region
        $region33: #{hfanvos_forward.1} parent=11 // pred_check
          %p312 = pneg %p172
        $region34: #{hfanvos_forward.1} parent=11 // pred_check_branch
          %314 = sbr.rel (%p312) target = $region36
        $region35: #{hfanvos_forward.1} parent=11 // pred_region
          _
        $region36: #{hfanvos_forward.1} parent=11 // pred_fallthru
          _
        // Predicated region
        $region37: #{hfanvos_forward.1} parent=11 // pred_check
          %p315 = pneg %p193
        $region38: #{hfanvos_forward.1} parent=11 // pred_check_branch
          %317 = sbr.rel (%p315) target = $region40
        $region39: #{hfanvos_forward.1} parent=11 // pred_region
          _
        $region40: #{hfanvos_forward.1} parent=11 // pred_fallthru
          _
        // Predicated region
        $region41: #{hfanvos_forward.1} parent=11 // pred_check
          %p318 = pneg %p214
        $region42: #{hfanvos_forward.1} parent=11 // pred_check_branch
          %320 = sbr.rel (%p318) target = $region44
        $region43: #{hfanvos_forward.1} parent=11 // pred_region
          _
        $region44: #{hfanvos_forward.1} parent=11 // pred_fallthru
          _
        // Predicated region
        $region45: #{hfanvos_forward.1} parent=11 // pred_check
          %p321 = pneg %p235
        $region46: #{hfanvos_forward.1} parent=11 // pred_check_branch
          %323 = sbr.rel (%p321) target = $region48
        $region47: #{hfanvos_forward.1} parent=11 // pred_region
          _
        $region48: #{hfanvos_forward.1} parent=11 // pred_fallthru
          _
        // Predicated region
        $region49: #{hfanvos_forward.1} parent=11 // pred_check
          %p324 = pneg %p256
        $region50: #{hfanvos_forward.1} parent=11 // pred_check_branch
          %326 = sbr.rel (%p324) target = $region52
        $region51: #{hfanvos_forward.1} parent=11 // pred_region
          _
        $region52: #{hfanvos_forward.1} parent=11 // pred_fallthru
          _
      $region12: #{hfanvos_forward.1} parent=5 // pred_fallthru
        _
      %p327 = scmp.lt.s32.totalorder %s20, 4
      // Predicated region
      $region53: #{hfanvos_forward.1} parent=5 // pred_check
        %p328 = pneg %p327
      $region54: #{hfanvos_forward.1} parent=5 // pred_check_branch
        %330 = sbr.rel (%p328) target = $region56
      $region55: #{hfanvos_forward.1} parent=5 // pred_region
        // Predicated region
        $region57: #{hfanvos_forward.1} parent=55 // pred_check
          %p331 = pneg %p40
        $region58: #{hfanvos_forward.1} parent=55 // pred_check_branch
          %333 = sbr.rel (%p331) target = $region60
        $region59: #{hfanvos_forward.1} parent=55 // pred_region
          %p334 = scmp.lt.s32.totalorder %s20, 3
          %s335 = scalar_select %p334, %s20, 3
          %s336 = smul.addr %s335, 4
          %s337 = smul.addr %s336, 8
          %s338 = scalar_lea.vmem %s0, %s337
        $region60: #{hfanvos_forward.1} parent=55 // pred_fallthru
          _
      $region56: #{hfanvos_forward.1} parent=5 // pred_fallthru
        _
      %p339 = scmp.le.s32.totalorder 1, %s20
      %p340 = scmp.lt.s32.totalorder %s20, 5
      %p341 = pnand %p339, %p340
      %p342 = pneg %p341
      // Predicated region
      $region61: #{hfanvos_forward.1} parent=5 // pred_check
        _
      $region62: #{hfanvos_forward.1} parent=5 // pred_check_branch
        %344 = sbr.rel (%p341) target = $region64
      $region63: #{hfanvos_forward.1} parent=5 // pred_region
        %s345 = ssub.s32 %s20, 1
        %p346 = scmp.lt.s32.totalorder %s25, 3
        %s347 = scalar_select %p346, %s25, 3
        %s348 = smul.addr %s347, 4
        %s349 = smul.addr %s348, 8
        %s350 = scalar_lea.vmem %s0, %s349
        %p351 = pneg %p46
        %p352 = pneg %p43
        %p353 = pneg %p67
        %p354 = pneg %p64
        %p355 = pneg %p88
        %p356 = pneg %p85
        %p357 = pneg %p109
        %p358 = pneg %p106
        %p359 = pneg %p130
        %p360 = pneg %p127
        %p361 = pneg %p151
        %p362 = pneg %p148
        %p363 = pneg %p172
        %p364 = pneg %p169
        %p365 = pneg %p193
        %p366 = pneg %p190
        %p367 = pneg %p214
        %p368 = pneg %p211
        %p369 = pneg %p235
        %p370 = pneg %p232
        %p371 = pneg %p256
        %p372 = pneg %p253
        %p373 = pneg %p282
        %p374 = pneg %p279
        %s375 = sand.u32 %s269, 1
        %s376 = scalar_lea.sflag [#allocation4], %s375
        %s377 = sand.u32 %s269, 1
        %s378 = smul.addr %s377, 16
        %s379 = scalar_lea.vmem [#allocation3], %s378
        %p380 = scmp.lt.s32.totalorder %s25, 3
        %s381 = scalar_select %p380, %s25, 3
        %s382 = smul.addr %s381, 4
        %s383 = smul.addr %s382, 8
        %s384 = scalar_lea.vmem %s0, %s383
        %v385 = vld [vmem:[%s9] sm:$0xff]
        %v386 = vld [vmem:[%s9 + $0x8] sm:$0x3f]
        %v387 = vld [vmem:[%s10] sm:$0x3]
        %v388 = vld [vmem:[%s384] sm:$0xff]
        %v389 = vld [vmem:[%s384 + $0x8] sm:$0xff]
        %v390 = vld [vmem:[%s384 + $0x10] sm:$0xff]
        %v391 = vld [vmem:[%s384 + $0x18] sm:$0xff]
        %v392 = vld [vmem:[%s1] sm:$0xff]
        %v393 = vld [vmem:[%s1 + $0x8] sm:$0xff]
        %v394 = vld [vmem:[%s1 + $0x10] sm:$0xff]
        %v395 = vld [vmem:[%s1 + $0x18] sm:$0xff]
        %v396 = vld [vmem:[%s1 + $0x20] sm:$0xff]
        %v397 = vld [vmem:[%s1 + $0x28] sm:$0xff]
        %v398 = vld [vmem:[%s1 + $0x30] sm:$0xff]
        %v399 = vld [vmem:[%s1 + $0x38] sm:$0xff]
        %v400 = vld [vmem:[%s1 + $0x40] sm:$0xff]
        %v401 = vld [vmem:[%s1 + $0x48] sm:$0xff]
        %v402 = vld [vmem:[%s1 + $0x50] sm:$0xff]
        %v403 = vld [vmem:[%s1 + $0x58] sm:$0xff]
        %v404 = vld [vmem:[%s1 + $0x60] sm:$0xff]
        %v405 = vld [vmem:[%s1 + $0x68] sm:$0xff]
        %v406 = vld [vmem:[%s1 + $0x70] sm:$0xff]
        %v407 = vld [vmem:[%s1 + $0x78] sm:$0xff]
        %v408 = vld [vmem:[%s1 + $0x80] sm:$0xff]
        %v409 = vld [vmem:[%s1 + $0x88] sm:$0xff]
        %v410 = vld [vmem:[%s1 + $0x90] sm:$0x7]
        %v411 = vlaneseq
        %v412 = vshrl.u32 %v411, 7
        %v413 = vsub.s32 0, %v412
        %v414 = vrot.slane %v385, %v413
        %vm415 = vcmask 154624
        %v417 = vsel %vm415, %v389, 0
        %v420 = vsel %vm415, %v391, 0
        %vm422 = vcmask 1042432
        %v424 = vsel %vm422, %v410, 0
        %426 = vmatprep.subr.mxu0 0.0
        %427 = vmatpush1.msra.mxu0 %v407
        %428 = vmatprep.subr.mxu0 0.0
        %429 = vmatpush1.msra.mxu0 %v406
        %430 = vmatprep.subr.mxu0 0.0
        %431 = vmatpush1.msra.mxu0 %v405
        %432 = vmatprep.subr.mxu0 0.0
        %433 = vmatpush1.msra.mxu0 %v404
        %434 = vmatprep.subr.mxu0 0.0
        %435 = vmatpush1.msra.mxu0 %v403
        %436 = vmatprep.subr.mxu0 0.0
        %437 = vmatpush1.msra.mxu0 %v402
        %438 = vmatprep.subr.mxu0 0.0
        %439 = vmatpush1.msra.mxu0 %v401
        %440 = vmatprep.subr.mxu0 0.0
        %441 = vmatpush1.msra.mxu0 %v400
        %442 = vmatprep.subr.mxu0 0.0
        %443 = vmatpush1.msra.mxu0 %v399
        %444 = vmatprep.subr.mxu0 0.0
        %445 = vmatpush1.msra.mxu0 %v398
        %446 = vmatprep.subr.mxu0 0.0
        %447 = vmatpush1.msra.mxu0 %v397
        %448 = vmatprep.subr.mxu0 0.0
        %449 = vmatpush1.msra.mxu0 %v396
        %450 = vmatprep.subr.mxu0 0.0
        %451 = vmatpush1.msra.mxu0 %v395
        %452 = vmatprep.subr.mxu0 0.0
        %453 = vmatpush1.msra.mxu0 %v394
        %454 = vmatprep.subr.mxu0 0.0
        %455 = vmatpush1.msra.mxu0 %v393
        %456 = vmatprep.subr.mxu0 0.0
        %457 = vmatpush1.msra.mxu0 %v392
        %458 = vmatprep.subr.mxu0 0.0
        %459 = vmatpush2.msra.mxu0 0.0
        %460 = vmatprep.subr.mxu0 0.0
        %461 = vmatpush2.msra.mxu0 0.0
        %462 = vmatprep.subr.mxu0 0.0
        %463 = vmatpush2.msra.mxu0 0.0
        %464 = vmatprep.subr.mxu0 0.0
        %465 = vmatpush2.msra.mxu0 0.0
        %466 = vmatprep.subr.mxu0 0.0
        %467 = vmatpush2.msra.mxu0 0.0
        %468 = vmatprep.subr.mxu0 0.0
        %469 = vmatpush2.msra.mxu0 0.0
        %470 = vmatprep.subr.mxu0 0.0
        %471 = vmatpush2.msra.mxu0 0.0
        %472 = vmatprep.subr.mxu0 0.0
        %473 = vmatpush2.msra.mxu0 0.0
        %474 = vmatprep.subr.mxu0 0.0
        %475 = vmatpush2.msra.mxu0 0.0
        %476 = vmatprep.subr.mxu0 0.0
        %477 = vmatpush2.msra.mxu0 0.0
        %478 = vmatprep.subr.mxu0 0.0
        %479 = vmatpush2.msra.mxu0 0.0
        %480 = vmatprep.subr.mxu0 0.0
        %481 = vmatpush2.msra.mxu0 0.0
        %482 = vmatprep.subr.mxu0 0.0
        %483 = vmatpush2.msra.mxu0 0.0
        %484 = vmatprep.subr.mxu0 0.0
        %485 = vmatpush2.msra.mxu0 %v424
        %486 = vmatprep.subr.mxu0 0.0
        %487 = vmatpush2.msra.mxu0 %v409
        %488 = vmatprep.subr.mxu0 0.0
        %489 = vmatpush2.msra.mxu0 %v408
        %490 = vmatprep.mubr.f32.mxu0 %v417
        %491 = vmatmul.mubr.f32.gmra.mxu0 %v388
        %v492 = vpop.f32.mrf.mxu0
        %v493 = vadd.f32 %v414, %v492
        %v494 = vpop.f32.mrf.mxu0
        %495 = vmatprep.mubr.f32.mxu0 %v420
        %496 = vmatmul.mubr.f32.gmra.mxu0 %v390
        %v497 = vpop.f32.mrf.mxu0
        %v498 = vadd.f32 %v414, %v497
        %v499 = vpop.f32.mrf.mxu0
        %500 = vdwg.mxu0
        %vm501 = vcmask 261120
        %v502 = vsel %vm501, %v493, 0.0
        %503 = vadd.xlane.f32.xlu0 %v502
        %v504 = vpop.xlane.xlu0 %503
        %v505 = vsel %vm501, %v498, 0.0
        %506 = vadd.xlane.f32.xlu0 %v505
        %v507 = vpop.xlane.xlu0 %506
        %v508 = vrcp.pop 32.0
        %v509 = vmul.f32 %v504, %v508
        %v510 = vmul.f32 %v507, %v508
        %v511 = vsub.f32 %v493, %v509
        %v512 = vsub.f32 %v498, %v510
        %v513 = vmul.f32 %v511, %v511
        %v514 = vmul.f32 %v512, %v512
        %v515 = vsel %vm501, %v513, 0.0
        %516 = vadd.xlane.f32.xlu0 %v515
        %v517 = vpop.xlane.xlu0 %516
        %v518 = vsel %vm501, %v514, 0.0
        %519 = vadd.xlane.f32.xlu0 %v518
        %v520 = vpop.xlane.xlu0 %519
        %v521 = vmul.f32 %v517, %v508
        %v522 = vmul.f32 %v520, %v508
        %v523 = vadd.f32 %v521, 1e-05
        %v524 = vadd.f32 %v522, 1e-05
        %v525 = vrsqrt.pop %v523
        %v526 = vrsqrt.pop %v524
        %v527 = vmul.f32 %v511, %v525
        %v528 = vmul.f32 %v512, %v526
        %v529 = vlaneseq
        %v530 = vshrl.u32 %v529, 7
        %v531 = vsub.s32 1, %v530
        %v532 = vrot.slane %v385, %v531
        %v533 = vmul.f32 %v527, %v532
        %v534 = vmul.f32 %v528, %v532
        %v535 = vlaneseq
        %v536 = vshrl.u32 %v535, 7
        %v537 = vsub.s32 2, %v536
        %v538 = vrot.slane %v385, %v537
        %v539 = vadd.f32 %v533, %v538
        %v540 = vadd.f32 %v534, %v538
        %v541 = vsel %vm501, %v539, 0.0
        %542 = vadd.xlane.f32.xlu0 %v541
        %v543 = vpop.xlane.xlu0 %542
        %v544 = vsel %vm501, %v540, 0.0
        %545 = vadd.xlane.f32.xlu0 %v544
        %v546 = vpop.xlane.xlu0 %545
        %v547 = vmul.f32 %v543, %v508
        %v548 = vmul.f32 %v546, %v508
        %v549 = vsub.f32 %v539, %v547
        %v550 = vsub.f32 %v540, %v548
        %v551 = vmul.f32 %v549, %v549
        %v552 = vmul.f32 %v550, %v550
        %v553 = vsel %vm501, %v551, 0.0
        %554 = vadd.xlane.f32.xlu0 %v553
        %v555 = vpop.xlane.xlu0 %554
        %v556 = vsel %vm501, %v552, 0.0
        %557 = vadd.xlane.f32.xlu0 %v556
        %v558 = vpop.xlane.xlu0 %557
        %v559 = vmul.f32 %v555, %v508
        %v560 = vmul.f32 %v558, %v508
        %v561 = vadd.f32 %v559, 1e-05
        %v562 = vadd.f32 %v560, 1e-05
        %v563 = vrsqrt.pop %v561
        %v564 = vrsqrt.pop %v562
        %v565 = vmul.f32 %v549, %v563
        %v566 = vmul.f32 %v550, %v564
        %v567 = vlaneseq
        %v568 = vshrl.u32 %v567, 7
        %v569 = vsub.s32 3, %v568
        %v570 = vrot.slane %v385, %v569
        %v571 = vmul.f32 %v565, %v570
        %v572 = vmul.f32 %v566, %v570
        %v573 = vlaneseq
        %v574 = vshrl.u32 %v573, 7
        %v575 = vsub.s32 4, %v574
        %v576 = vrot.slane %v385, %v575
        %v577 = vadd.f32 %v571, %v576
        %v578 = vadd.f32 %v572, %v576
        %v579 = vld [vmem:[%s2] sm:$0xff]
        %v580 = vld [vmem:[%s2 + $0x8] sm:$0xff]
        %v581 = vld [vmem:[%s2 + $0x10] sm:$0xff]
        %v582 = vld [vmem:[%s2 + $0x18] sm:$0xff]
        %v583 = vlaneseq
        %v584 = vshrl.u32 %v583, 7
        %v585 = vsub.s32 5, %v584
        %v586 = vrot.slane %v385, %v585
        %v588 = vsel %vm501, %v577, 0
        %v591 = vsel %vm501, %v578, 0
        %593 = vmatprep.subr.mxu0 0.0
        %594 = vmatpush1.msra.mxu0 0.0
        %595 = vmatprep.subr.mxu0 0.0
        %596 = vmatpush1.msra.mxu0 0.0
        %597 = vmatprep.subr.mxu0 0.0
        %598 = vmatpush1.msra.mxu0 0.0
        %599 = vmatprep.subr.mxu0 0.0
        %600 = vmatpush1.msra.mxu0 0.0
        %601 = vmatprep.subr.mxu0 0.0
        %602 = vmatpush1.msra.mxu0 0.0
        %603 = vmatprep.subr.mxu0 0.0
        %604 = vmatpush1.msra.mxu0 0.0
        %605 = vmatprep.subr.mxu0 0.0
        %606 = vmatpush1.msra.mxu0 0.0
        %607 = vmatprep.subr.mxu0 0.0
        %608 = vmatpush1.msra.mxu0 0.0
        %609 = vmatprep.subr.mxu0 0.0
        %610 = vmatpush1.msra.mxu0 0.0
        %611 = vmatprep.subr.mxu0 0.0
        %612 = vmatpush1.msra.mxu0 0.0
        %613 = vmatprep.subr.mxu0 0.0
        %614 = vmatpush1.msra.mxu0 0.0
        %615 = vmatprep.subr.mxu0 0.0
        %616 = vmatpush1.msra.mxu0 0.0
        %617 = vmatprep.subr.mxu0 0.0
        %618 = vmatpush1.msra.mxu0 %v582
        %619 = vmatprep.subr.mxu0 0.0
        %620 = vmatpush1.msra.mxu0 %v581
        %621 = vmatprep.subr.mxu0 0.0
        %622 = vmatpush1.msra.mxu0 %v580
        %623 = vmatprep.subr.mxu0 0.0
        %624 = vmatpush1.msra.mxu0 %v579
        %625 = vmatprep.subr.mxu0 0.0
        %626 = vmatpush2.msra.mxu0 0.0
        %627 = vmatprep.subr.mxu0 0.0
        %628 = vmatpush2.msra.mxu0 0.0
        %629 = vmatprep.subr.mxu0 0.0
        %630 = vmatpush2.msra.mxu0 0.0
        %631 = vmatprep.subr.mxu0 0.0
        %632 = vmatpush2.msra.mxu0 0.0
        %633 = vmatprep.subr.mxu0 0.0
        %634 = vmatpush2.msra.mxu0 0.0
        %635 = vmatprep.subr.mxu0 0.0
        %636 = vmatpush2.msra.mxu0 0.0
        %637 = vmatprep.subr.mxu0 0.0
        %638 = vmatpush2.msra.mxu0 0.0
        %639 = vmatprep.subr.mxu0 0.0
        %640 = vmatpush2.msra.mxu0 0.0
        %641 = vmatprep.subr.mxu0 0.0
        %642 = vmatpush2.msra.mxu0 0.0
        %643 = vmatprep.subr.mxu0 0.0
        %644 = vmatpush2.msra.mxu0 0.0
        %645 = vmatprep.subr.mxu0 0.0
        %646 = vmatpush2.msra.mxu0 0.0
        %647 = vmatprep.subr.mxu0 0.0
        %648 = vmatpush2.msra.mxu0 0.0
        %649 = vmatprep.subr.mxu0 0.0
        %650 = vmatpush2.msra.mxu0 0.0
        %651 = vmatprep.subr.mxu0 0.0
        %652 = vmatpush2.msra.mxu0 0.0
        %653 = vmatprep.subr.mxu0 0.0
        %654 = vmatpush2.msra.mxu0 0.0
        %655 = vmatprep.subr.mxu0 0.0
        %656 = vmatpush2.msra.mxu0 0.0
        %657 = vmatprep.mubr.f32.mxu0 0.0
        %658 = vmatmul.mubr.f32.gmra.mxu0 %v588
        %v659 = vpop.f32.mrf.mxu0
        %v660 = vadd.f32 %v586, %v659
        %v661 = vpop.f32.mrf.mxu0
        %662 = vmatprep.mubr.f32.mxu0 0.0
        %663 = vmatmul.mubr.f32.gmra.mxu0 %v591
        %v664 = vpop.f32.mrf.mxu0
        %v665 = vadd.f32 %v586, %v664
        %v666 = vpop.f32.mrf.mxu0
        %667 = vdwg.mxu0
        %v668 = vld [vmem:[%s3] sm:$0xff]
        %v669 = vld [vmem:[%s3 + $0x8] sm:$0xff]
        %v670 = vld [vmem:[%s3 + $0x10] sm:$0xff]
        %v671 = vld [vmem:[%s3 + $0x18] sm:$0xff]
        %v672 = vlaneseq
        %v673 = vshrl.u32 %v672, 7
        %v674 = vsub.s32 6, %v673
        %v675 = vrot.slane %v385, %v674
        %676 = vmatprep.subr.mxu0 0.0
        %677 = vmatpush1.msra.mxu0 0.0
        %678 = vmatprep.subr.mxu0 0.0
        %679 = vmatpush1.msra.mxu0 0.0
        %680 = vmatprep.subr.mxu0 0.0
        %681 = vmatpush1.msra.mxu0 0.0
        %682 = vmatprep.subr.mxu0 0.0
        %683 = vmatpush1.msra.mxu0 0.0
        %684 = vmatprep.subr.mxu0 0.0
        %685 = vmatpush1.msra.mxu0 0.0
        %686 = vmatprep.subr.mxu0 0.0
        %687 = vmatpush1.msra.mxu0 0.0
        %688 = vmatprep.subr.mxu0 0.0
        %689 = vmatpush1.msra.mxu0 0.0
        %690 = vmatprep.subr.mxu0 0.0
        %691 = vmatpush1.msra.mxu0 0.0
        %692 = vmatprep.subr.mxu0 0.0
        %693 = vmatpush1.msra.mxu0 0.0
        %694 = vmatprep.subr.mxu0 0.0
        %695 = vmatpush1.msra.mxu0 0.0
        %696 = vmatprep.subr.mxu0 0.0
        %697 = vmatpush1.msra.mxu0 0.0
        %698 = vmatprep.subr.mxu0 0.0
        %699 = vmatpush1.msra.mxu0 0.0
        %700 = vmatprep.subr.mxu0 0.0
        %701 = vmatpush1.msra.mxu0 %v671
        %702 = vmatprep.subr.mxu0 0.0
        %703 = vmatpush1.msra.mxu0 %v670
        %704 = vmatprep.subr.mxu0 0.0
        %705 = vmatpush1.msra.mxu0 %v669
        %706 = vmatprep.subr.mxu0 0.0
        %707 = vmatpush1.msra.mxu0 %v668
        %708 = vmatprep.subr.mxu0 0.0
        %709 = vmatpush2.msra.mxu0 0.0
        %710 = vmatprep.subr.mxu0 0.0
        %711 = vmatpush2.msra.mxu0 0.0
        %712 = vmatprep.subr.mxu0 0.0
        %713 = vmatpush2.msra.mxu0 0.0
        %714 = vmatprep.subr.mxu0 0.0
        %715 = vmatpush2.msra.mxu0 0.0
        %716 = vmatprep.subr.mxu0 0.0
        %717 = vmatpush2.msra.mxu0 0.0
        %718 = vmatprep.subr.mxu0 0.0
        %719 = vmatpush2.msra.mxu0 0.0
        %720 = vmatprep.subr.mxu0 0.0
        %721 = vmatpush2.msra.mxu0 0.0
        %722 = vmatprep.subr.mxu0 0.0
        %723 = vmatpush2.msra.mxu0 0.0
        %724 = vmatprep.subr.mxu0 0.0
        %725 = vmatpush2.msra.mxu0 0.0
        %726 = vmatprep.subr.mxu0 0.0
        %727 = vmatpush2.msra.mxu0 0.0
        %728 = vmatprep.subr.mxu0 0.0
        %729 = vmatpush2.msra.mxu0 0.0
        %730 = vmatprep.subr.mxu0 0.0
        %731 = vmatpush2.msra.mxu0 0.0
        %732 = vmatprep.subr.mxu0 0.0
        %733 = vmatpush2.msra.mxu0 0.0
        %734 = vmatprep.subr.mxu0 0.0
        %735 = vmatpush2.msra.mxu0 0.0
        %736 = vmatprep.subr.mxu0 0.0
        %737 = vmatpush2.msra.mxu0 0.0
        %738 = vmatprep.subr.mxu0 0.0
        %739 = vmatpush2.msra.mxu0 0.0
        %740 = vmatprep.mubr.f32.mxu0 0.0
        %741 = vmatmul.mubr.f32.gmra.mxu0 %v588
        %v742 = vpop.f32.mrf.mxu0
        %v743 = vadd.f32 %v675, %v742
        %v744 = vpop.f32.mrf.mxu0
        %745 = vmatprep.mubr.f32.mxu0 0.0
        %746 = vmatmul.mubr.f32.gmra.mxu0 %v591
        %v747 = vpop.f32.mrf.mxu0
        %v748 = vadd.f32 %v675, %v747
        %v749 = vpop.f32.mrf.mxu0
        %750 = vdwg.mxu0
        %v751 = vld [vmem:[%s4] sm:$0xff]
        %v752 = vld [vmem:[%s4 + $0x8] sm:$0xff]
        %v753 = vld [vmem:[%s4 + $0x10] sm:$0xff]
        %v754 = vld [vmem:[%s4 + $0x18] sm:$0xff]
        %v755 = vlaneseq
        %v756 = vshrl.u32 %v755, 7
        %v757 = vsub.s32 7, %v756
        %v758 = vrot.slane %v385, %v757
        %759 = vmatprep.subr.mxu0 0.0
        %760 = vmatpush1.msra.mxu0 0.0
        %761 = vmatprep.subr.mxu0 0.0
        %762 = vmatpush1.msra.mxu0 0.0
        %763 = vmatprep.subr.mxu0 0.0
        %764 = vmatpush1.msra.mxu0 0.0
        %765 = vmatprep.subr.mxu0 0.0
        %766 = vmatpush1.msra.mxu0 0.0
        %767 = vmatprep.subr.mxu0 0.0
        %768 = vmatpush1.msra.mxu0 0.0
        %769 = vmatprep.subr.mxu0 0.0
        %770 = vmatpush1.msra.mxu0 0.0
        %771 = vmatprep.subr.mxu0 0.0
        %772 = vmatpush1.msra.mxu0 0.0
        %773 = vmatprep.subr.mxu0 0.0
        %774 = vmatpush1.msra.mxu0 0.0
        %775 = vmatprep.subr.mxu0 0.0
        %776 = vmatpush1.msra.mxu0 0.0
        %777 = vmatprep.subr.mxu0 0.0
        %778 = vmatpush1.msra.mxu0 0.0
        %779 = vmatprep.subr.mxu0 0.0
        %780 = vmatpush1.msra.mxu0 0.0
        %781 = vmatprep.subr.mxu0 0.0
        %782 = vmatpush1.msra.mxu0 0.0
        %783 = vmatprep.subr.mxu0 0.0
        %784 = vmatpush1.msra.mxu0 %v754
        %785 = vmatprep.subr.mxu0 0.0
        %786 = vmatpush1.msra.mxu0 %v753
        %787 = vmatprep.subr.mxu0 0.0
        %788 = vmatpush1.msra.mxu0 %v752
        %789 = vmatprep.subr.mxu0 0.0
        %790 = vmatpush1.msra.mxu0 %v751
        %791 = vmatprep.subr.mxu0 0.0
        %792 = vmatpush2.msra.mxu0 0.0
        %793 = vmatprep.subr.mxu0 0.0
        %794 = vmatpush2.msra.mxu0 0.0
        %795 = vmatprep.subr.mxu0 0.0
        %796 = vmatpush2.msra.mxu0 0.0
        %797 = vmatprep.subr.mxu0 0.0
        %798 = vmatpush2.msra.mxu0 0.0
        %799 = vmatprep.subr.mxu0 0.0
        %800 = vmatpush2.msra.mxu0 0.0
        %801 = vmatprep.subr.mxu0 0.0
        %802 = vmatpush2.msra.mxu0 0.0
        %803 = vmatprep.subr.mxu0 0.0
        %804 = vmatpush2.msra.mxu0 0.0
        %805 = vmatprep.subr.mxu0 0.0
        %806 = vmatpush2.msra.mxu0 0.0
        %807 = vmatprep.subr.mxu0 0.0
        %808 = vmatpush2.msra.mxu0 0.0
        %809 = vmatprep.subr.mxu0 0.0
        %810 = vmatpush2.msra.mxu0 0.0
        %811 = vmatprep.subr.mxu0 0.0
        %812 = vmatpush2.msra.mxu0 0.0
        %813 = vmatprep.subr.mxu0 0.0
        %814 = vmatpush2.msra.mxu0 0.0
        %815 = vmatprep.subr.mxu0 0.0
        %816 = vmatpush2.msra.mxu0 0.0
        %817 = vmatprep.subr.mxu0 0.0
        %818 = vmatpush2.msra.mxu0 0.0
        %819 = vmatprep.subr.mxu0 0.0
        %820 = vmatpush2.msra.mxu0 0.0
        %821 = vmatprep.subr.mxu0 0.0
        %822 = vmatpush2.msra.mxu0 0.0
        %823 = vmatprep.mubr.f32.mxu0 0.0
        %824 = vmatmul.mubr.f32.gmra.mxu0 %v588
        %v825 = vpop.f32.mrf.mxu0
        %v826 = vadd.f32 %v758, %v825
        %v827 = vpop.f32.mrf.mxu0
        %828 = vmatprep.mubr.f32.mxu0 0.0
        %829 = vmatmul.mubr.f32.gmra.mxu0 %v591
        %v830 = vpop.f32.mrf.mxu0
        %v831 = vadd.f32 %v758, %v830
        %v832 = vpop.f32.mrf.mxu0
        %833 = vdwg.mxu0
        %v835 = vsel %vm501, %v660, 0
        %v838 = vsel %vm501, %v665, 0
        %v841 = vsel %vm501, %v743, 0
        %v844 = vsel %vm501, %v748, 0
        %846 = vmatprep.subr.mxu0 0.0
        %847 = vmatpush1.xpose.msra.mxu0 0.0
        %848 = vmatprep.subr.mxu0 0.0
        %849 = vmatpush1.xpose.msra.mxu0 0.0
        %850 = vmatprep.subr.mxu0 0.0
        %851 = vmatpush1.xpose.msra.mxu0 0.0
        %852 = vmatprep.subr.mxu0 0.0
        %853 = vmatpush1.xpose.msra.mxu0 0.0
        %854 = vmatprep.subr.mxu0 0.0
        %855 = vmatpush1.xpose.msra.mxu0 0.0
        %856 = vmatprep.subr.mxu0 0.0
        %857 = vmatpush1.xpose.msra.mxu0 0.0
        %858 = vmatprep.subr.mxu0 0.0
        %859 = vmatpush1.xpose.msra.mxu0 0.0
        %860 = vmatprep.subr.mxu0 0.0
        %861 = vmatpush1.xpose.msra.mxu0 0.0
        %862 = vmatprep.subr.mxu0 0.0
        %863 = vmatpush1.xpose.msra.mxu0 0.0
        %864 = vmatprep.subr.mxu0 0.0
        %865 = vmatpush1.xpose.msra.mxu0 0.0
        %866 = vmatprep.subr.mxu0 0.0
        %867 = vmatpush1.xpose.msra.mxu0 0.0
        %868 = vmatprep.subr.mxu0 0.0
        %869 = vmatpush1.xpose.msra.mxu0 0.0
        %870 = vmatprep.subr.mxu0 0.0
        %871 = vmatpush1.xpose.msra.mxu0 0.0
        %872 = vmatprep.subr.mxu0 0.0
        %873 = vmatpush1.xpose.msra.mxu0 0.0
        %874 = vmatprep.subr.mxu0 0.0
        %875 = vmatpush1.xpose.msra.mxu0 %v844
        %876 = vmatprep.subr.mxu0 0.0
        %877 = vmatpush1.xpose.msra.mxu0 %v841
        %878 = vmatprep.subr.mxu0 0.0
        %879 = vmatpush2.xpose.msra.mxu0 0.0
        %880 = vmatprep.subr.mxu0 0.0
        %881 = vmatpush2.xpose.msra.mxu0 0.0
        %882 = vmatprep.subr.mxu0 0.0
        %883 = vmatpush2.xpose.msra.mxu0 0.0
        %884 = vmatprep.subr.mxu0 0.0
        %885 = vmatpush2.xpose.msra.mxu0 0.0
        %886 = vmatprep.subr.mxu0 0.0
        %887 = vmatpush2.xpose.msra.mxu0 0.0
        %888 = vmatprep.subr.mxu0 0.0
        %889 = vmatpush2.xpose.msra.mxu0 0.0
        %890 = vmatprep.subr.mxu0 0.0
        %891 = vmatpush2.xpose.msra.mxu0 0.0
        %892 = vmatprep.subr.mxu0 0.0
        %893 = vmatpush2.xpose.msra.mxu0 0.0
        %894 = vmatprep.subr.mxu0 0.0
        %895 = vmatpush2.xpose.msra.mxu0 0.0
        %896 = vmatprep.subr.mxu0 0.0
        %897 = vmatpush2.xpose.msra.mxu0 0.0
        %898 = vmatprep.subr.mxu0 0.0
        %899 = vmatpush2.xpose.msra.mxu0 0.0
        %900 = vmatprep.subr.mxu0 0.0
        %901 = vmatpush2.xpose.msra.mxu0 0.0
        %902 = vmatprep.subr.mxu0 0.0
        %903 = vmatpush2.xpose.msra.mxu0 0.0
        %904 = vmatprep.subr.mxu0 0.0
        %905 = vmatpush2.xpose.msra.mxu0 0.0
        %906 = vmatprep.subr.mxu0 0.0
        %907 = vmatpush2.xpose.msra.mxu0 0.0
        %908 = vmatprep.subr.mxu0 0.0
        %909 = vmatpush2.xpose.msra.mxu0 0.0
        %910 = vmatprep.mubr.f32.mxu0 0.0
        %911 = vmatmul.mubr.f32.gmra.mxu0 %v835
        %v912 = vpop.f32.mrf.mxu0
        %v913 = vadd.f32 0.0, %v912
        %v914 = vpop.f32.mrf.mxu0
        %915 = vmatprep.mubr.f32.mxu0 0.0
        %916 = vmatmul.mubr.f32.gmra.mxu0 %v838
        %v917 = vpop.f32.mrf.mxu0
        %v918 = vadd.f32 0.0, %v917
        %v919 = vpop.f32.mrf.mxu0
        %920 = vdwg.mxu0
        %v921 = vmul.f32 %v913, 0.17677669
        %v922 = vmul.f32 %v918, 0.17677669
        %vm923 = vcmask 130048
        %v924 = vsel %vm923, %v921, -inf
        %925 = vmax.xlane.f32.xlu0 %v924
        %v926 = vpop.xlane.xlu0 %925
        %v927 = vsel %vm923, %v922, -inf
        %928 = vmax.xlane.f32.xlu0 %v927
        %v929 = vpop.xlane.xlu0 %928
        %v930 = vsub.f32 %v921, %v926
        %v931 = vsub.f32 %v922, %v929
        %v932 = vmul.f32 %v930, 1.442695
        %v933 = vpow.pop %v932
        %v934 = vmul.f32 %v931, 1.442695
        %v935 = vpow.pop %v934
        %v936 = vsel %vm923, %v933, 0.0
        %937 = vadd.xlane.f32.xlu0 %v936
        %v938 = vpop.xlane.xlu0 %937
        %v939 = vsel %vm923, %v935, 0.0
        %940 = vadd.xlane.f32.xlu0 %v939
        %v941 = vpop.xlane.xlu0 %940
        %v942 = vrcp.pop %v938
        %v943 = vrcp.pop %v941
        %v944 = vmul.f32 %v933, %v942
        %v945 = vmul.f32 %v935, %v943
        %v947 = vsel %vm923, %v944, 0
        %v950 = vsel %vm923, %v945, 0
        %952 = vmatprep.subr.mxu0 0.0
        %953 = vmatpush1.msra.mxu0 0.0
        %954 = vmatprep.subr.mxu0 0.0
        %955 = vmatpush1.msra.mxu0 0.0
        %956 = vmatprep.subr.mxu0 0.0
        %957 = vmatpush1.msra.mxu0 0.0
        %958 = vmatprep.subr.mxu0 0.0
        %959 = vmatpush1.msra.mxu0 0.0
        %960 = vmatprep.subr.mxu0 0.0
        %961 = vmatpush1.msra.mxu0 0.0
        %962 = vmatprep.subr.mxu0 0.0
        %963 = vmatpush1.msra.mxu0 0.0
        %964 = vmatprep.subr.mxu0 0.0
        %965 = vmatpush1.msra.mxu0 0.0
        %966 = vmatprep.subr.mxu0 0.0
        %967 = vmatpush1.msra.mxu0 0.0
        %968 = vmatprep.subr.mxu0 0.0
        %969 = vmatpush1.msra.mxu0 0.0
        %970 = vmatprep.subr.mxu0 0.0
        %971 = vmatpush1.msra.mxu0 0.0
        %972 = vmatprep.subr.mxu0 0.0
        %973 = vmatpush1.msra.mxu0 0.0
        %974 = vmatprep.subr.mxu0 0.0
        %975 = vmatpush1.msra.mxu0 0.0
        %976 = vmatprep.subr.mxu0 0.0
        %977 = vmatpush1.msra.mxu0 0.0
        %978 = vmatprep.subr.mxu0 0.0
        %979 = vmatpush1.msra.mxu0 0.0
        %980 = vmatprep.subr.mxu0 0.0
        %981 = vmatpush1.msra.mxu0 %v831
        %982 = vmatprep.subr.mxu0 0.0
        %983 = vmatpush1.msra.mxu0 %v826
        %984 = vmatprep.subr.mxu0 0.0
        %985 = vmatpush2.msra.mxu0 0.0
        %986 = vmatprep.subr.mxu0 0.0
        %987 = vmatpush2.msra.mxu0 0.0
        %988 = vmatprep.subr.mxu0 0.0
        %989 = vmatpush2.msra.mxu0 0.0
        %990 = vmatprep.subr.mxu0 0.0
        %991 = vmatpush2.msra.mxu0 0.0
        %992 = vmatprep.subr.mxu0 0.0
        %993 = vmatpush2.msra.mxu0 0.0
        %994 = vmatprep.subr.mxu0 0.0
        %995 = vmatpush2.msra.mxu0 0.0
        %996 = vmatprep.subr.mxu0 0.0
        %997 = vmatpush2.msra.mxu0 0.0
        %998 = vmatprep.subr.mxu0 0.0
        %999 = vmatpush2.msra.mxu0 0.0
        %1000 = vmatprep.subr.mxu0 0.0
        %1001 = vmatpush2.msra.mxu0 0.0
        %1002 = vmatprep.subr.mxu0 0.0
        %1003 = vmatpush2.msra.mxu0 0.0
        %1004 = vmatprep.subr.mxu0 0.0
        %1005 = vmatpush2.msra.mxu0 0.0
        %1006 = vmatprep.subr.mxu0 0.0
        %1007 = vmatpush2.msra.mxu0 0.0
        %1008 = vmatprep.subr.mxu0 0.0
        %1009 = vmatpush2.msra.mxu0 0.0
        %1010 = vmatprep.subr.mxu0 0.0
        %1011 = vmatpush2.msra.mxu0 0.0
        %1012 = vmatprep.subr.mxu0 0.0
        %1013 = vmatpush2.msra.mxu0 0.0
        %1014 = vmatprep.subr.mxu0 0.0
        %1015 = vmatpush2.msra.mxu0 0.0
        %1016 = vmatprep.mubr.f32.mxu0 0.0
        %1017 = vmatmul.mubr.f32.gmra.mxu0 %v947
        %v1018 = vpop.f32.mrf.mxu0
        %v1019 = vadd.f32 0.0, %v1018
        %v1020 = vpop.f32.mrf.mxu0
        %1021 = vmatprep.mubr.f32.mxu0 0.0
        %1022 = vmatmul.mubr.f32.gmra.mxu0 %v950
        %v1023 = vpop.f32.mrf.mxu0
        %v1024 = vadd.f32 0.0, %v1023
        %v1025 = vpop.f32.mrf.mxu0
        %1026 = vdwg.mxu0
        %v1027 = vld [vmem:[%s5] sm:$0xff]
        %v1028 = vld [vmem:[%s5 + $0x8] sm:$0xff]
        %v1029 = vld [vmem:[%s5 + $0x10] sm:$0xff]
        %v1030 = vld [vmem:[%s5 + $0x18] sm:$0xff]
        %v1031 = vlaneseq
        %v1032 = vshrl.u32 %v1031, 7
        %v1033 = vsub.s32 0, %v1032
        %v1034 = vrot.slane %v386, %v1033
        %v1036 = vsel %vm501, %v1019, 0
        %v1039 = vsel %vm501, %v1024, 0
        %1041 = vmatprep.subr.mxu0 0.0
        %1042 = vmatpush1.msra.mxu0 0.0
        %1043 = vmatprep.subr.mxu0 0.0
        %1044 = vmatpush1.msra.mxu0 0.0
        %1045 = vmatprep.subr.mxu0 0.0
        %1046 = vmatpush1.msra.mxu0 0.0
        %1047 = vmatprep.subr.mxu0 0.0
        %1048 = vmatpush1.msra.mxu0 0.0
        %1049 = vmatprep.subr.mxu0 0.0
        %1050 = vmatpush1.msra.mxu0 0.0
        %1051 = vmatprep.subr.mxu0 0.0
        %1052 = vmatpush1.msra.mxu0 0.0
        %1053 = vmatprep.subr.mxu0 0.0
        %1054 = vmatpush1.msra.mxu0 0.0
        %1055 = vmatprep.subr.mxu0 0.0
        %1056 = vmatpush1.msra.mxu0 0.0
        %1057 = vmatprep.subr.mxu0 0.0
        %1058 = vmatpush1.msra.mxu0 0.0
        %1059 = vmatprep.subr.mxu0 0.0
        %1060 = vmatpush1.msra.mxu0 0.0
        %1061 = vmatprep.subr.mxu0 0.0
        %1062 = vmatpush1.msra.mxu0 0.0
        %1063 = vmatprep.subr.mxu0 0.0
        %1064 = vmatpush1.msra.mxu0 0.0
        %1065 = vmatprep.subr.mxu0 0.0
        %1066 = vmatpush1.msra.mxu0 %v1030
        %1067 = vmatprep.subr.mxu0 0.0
        %1068 = vmatpush1.msra.mxu0 %v1029
        %1069 = vmatprep.subr.mxu0 0.0
        %1070 = vmatpush1.msra.mxu0 %v1028
        %1071 = vmatprep.subr.mxu0 0.0
        %1072 = vmatpush1.msra.mxu0 %v1027
        %1073 = vmatprep.subr.mxu0 0.0
        %1074 = vmatpush2.msra.mxu0 0.0
        %1075 = vmatprep.subr.mxu0 0.0
        %1076 = vmatpush2.msra.mxu0 0.0
        %1077 = vmatprep.subr.mxu0 0.0
        %1078 = vmatpush2.msra.mxu0 0.0
        %1079 = vmatprep.subr.mxu0 0.0
        %1080 = vmatpush2.msra.mxu0 0.0
        %1081 = vmatprep.subr.mxu0 0.0
        %1082 = vmatpush2.msra.mxu0 0.0
        %1083 = vmatprep.subr.mxu0 0.0
        %1084 = vmatpush2.msra.mxu0 0.0
        %1085 = vmatprep.subr.mxu0 0.0
        %1086 = vmatpush2.msra.mxu0 0.0
        %1087 = vmatprep.subr.mxu0 0.0
        %1088 = vmatpush2.msra.mxu0 0.0
        %1089 = vmatprep.subr.mxu0 0.0
        %1090 = vmatpush2.msra.mxu0 0.0
        %1091 = vmatprep.subr.mxu0 0.0
        %1092 = vmatpush2.msra.mxu0 0.0
        %1093 = vmatprep.subr.mxu0 0.0
        %1094 = vmatpush2.msra.mxu0 0.0
        %1095 = vmatprep.subr.mxu0 0.0
        %1096 = vmatpush2.msra.mxu0 0.0
        %1097 = vmatprep.subr.mxu0 0.0
        %1098 = vmatpush2.msra.mxu0 0.0
        %1099 = vmatprep.subr.mxu0 0.0
        %1100 = vmatpush2.msra.mxu0 0.0
        %1101 = vmatprep.subr.mxu0 0.0
        %1102 = vmatpush2.msra.mxu0 0.0
        %1103 = vmatprep.subr.mxu0 0.0
        %1104 = vmatpush2.msra.mxu0 0.0
        %1105 = vmatprep.mubr.f32.mxu0 0.0
        %1106 = vmatmul.mubr.f32.gmra.mxu0 %v1036
        %v1107 = vpop.f32.mrf.mxu0
        %v1108 = vadd.f32 %v1034, %v1107
        %v1109 = vpop.f32.mrf.mxu0
        %1110 = vmatprep.mubr.f32.mxu0 0.0
        %1111 = vmatmul.mubr.f32.gmra.mxu0 %v1039
        %v1112 = vpop.f32.mrf.mxu0
        %v1113 = vadd.f32 %v1034, %v1112
        %v1114 = vpop.f32.mrf.mxu0
        %1115 = vdwg.mxu0
        %v1116 = vadd.f32 %v539, %v1108
        %v1117 = vadd.f32 %v540, %v1113
        %v1118 = vsel %vm501, %v1116, 0.0
        %1119 = vadd.xlane.f32.xlu0 %v1118
        %v1120 = vpop.xlane.xlu0 %1119
        %v1121 = vsel %vm501, %v1117, 0.0
        %1122 = vadd.xlane.f32.xlu0 %v1121
        %v1123 = vpop.xlane.xlu0 %1122
        %v1124 = vmul.f32 %v1120, %v508
        %v1125 = vmul.f32 %v1123, %v508
        %v1126 = vsub.f32 %v1116, %v1124
        %v1127 = vsub.f32 %v1117, %v1125
        %v1128 = vmul.f32 %v1126, %v1126
        %v1129 = vmul.f32 %v1127, %v1127
        %v1130 = vsel %vm501, %v1128, 0.0
        %1131 = vadd.xlane.f32.xlu0 %v1130
        %v1132 = vpop.xlane.xlu0 %1131
        %v1133 = vsel %vm501, %v1129, 0.0
        %1134 = vadd.xlane.f32.xlu0 %v1133
        %v1135 = vpop.xlane.xlu0 %1134
        %v1136 = vmul.f32 %v1132, %v508
        %v1137 = vmul.f32 %v1135, %v508
        %v1138 = vadd.f32 %v1136, 1e-05
        %v1139 = vadd.f32 %v1137, 1e-05
        %v1140 = vrsqrt.pop %v1138
        %v1141 = vrsqrt.pop %v1139
        %v1142 = vmul.f32 %v1126, %v1140
        %v1143 = vmul.f32 %v1127, %v1141
        %v1144 = vlaneseq
        %v1145 = vshrl.u32 %v1144, 7
        %v1146 = vsub.s32 1, %v1145
        %v1147 = vrot.slane %v386, %v1146
        %v1148 = vmul.f32 %v1142, %v1147
        %v1149 = vmul.f32 %v1143, %v1147
        %v1150 = vlaneseq
        %v1151 = vshrl.u32 %v1150, 7
        %v1152 = vsub.s32 2, %v1151
        %v1153 = vrot.slane %v386, %v1152
        %v1154 = vadd.f32 %v1148, %v1153
        %v1155 = vadd.f32 %v1149, %v1153
        %v1156 = vld [vmem:[%s6] sm:$0xff]
        %v1157 = vld [vmem:[%s6 + $0x8] sm:$0xff]
        %v1158 = vld [vmem:[%s6 + $0x10] sm:$0xff]
        %v1159 = vld [vmem:[%s6 + $0x18] sm:$0xff]
        %v1160 = vlaneseq
        %v1161 = vshrl.u32 %v1160, 7
        %v1162 = vsub.s32 0, %v1161
        %v1163 = vrot.slane %v387, %v1162
        %v1165 = vsel %vm501, %v1154, 0
        %v1168 = vsel %vm501, %v1155, 0
        %1170 = vmatprep.subr.mxu0 0.0
        %1171 = vmatpush1.msra.mxu0 0.0
        %1172 = vmatprep.subr.mxu0 0.0
        %1173 = vmatpush1.msra.mxu0 0.0
        %1174 = vmatprep.subr.mxu0 0.0
        %1175 = vmatpush1.msra.mxu0 0.0
        %1176 = vmatprep.subr.mxu0 0.0
        %1177 = vmatpush1.msra.mxu0 0.0
        %1178 = vmatprep.subr.mxu0 0.0
        %1179 = vmatpush1.msra.mxu0 0.0
        %1180 = vmatprep.subr.mxu0 0.0
        %1181 = vmatpush1.msra.mxu0 0.0
        %1182 = vmatprep.subr.mxu0 0.0
        %1183 = vmatpush1.msra.mxu0 0.0
        %1184 = vmatprep.subr.mxu0 0.0
        %1185 = vmatpush1.msra.mxu0 0.0
        %1186 = vmatprep.subr.mxu0 0.0
        %1187 = vmatpush1.msra.mxu0 0.0
        %1188 = vmatprep.subr.mxu0 0.0
        %1189 = vmatpush1.msra.mxu0 0.0
        %1190 = vmatprep.subr.mxu0 0.0
        %1191 = vmatpush1.msra.mxu0 0.0
        %1192 = vmatprep.subr.mxu0 0.0
        %1193 = vmatpush1.msra.mxu0 0.0
        %1194 = vmatprep.subr.mxu0 0.0
        %1195 = vmatpush1.msra.mxu0 %v1159
        %1196 = vmatprep.subr.mxu0 0.0
        %1197 = vmatpush1.msra.mxu0 %v1158
        %1198 = vmatprep.subr.mxu0 0.0
        %1199 = vmatpush1.msra.mxu0 %v1157
        %1200 = vmatprep.subr.mxu0 0.0
        %1201 = vmatpush1.msra.mxu0 %v1156
        %1202 = vmatprep.subr.mxu0 0.0
        %1203 = vmatpush2.msra.mxu0 0.0
        %1204 = vmatprep.subr.mxu0 0.0
        %1205 = vmatpush2.msra.mxu0 0.0
        %1206 = vmatprep.subr.mxu0 0.0
        %1207 = vmatpush2.msra.mxu0 0.0
        %1208 = vmatprep.subr.mxu0 0.0
        %1209 = vmatpush2.msra.mxu0 0.0
        %1210 = vmatprep.subr.mxu0 0.0
        %1211 = vmatpush2.msra.mxu0 0.0
        %1212 = vmatprep.subr.mxu0 0.0
        %1213 = vmatpush2.msra.mxu0 0.0
        %1214 = vmatprep.subr.mxu0 0.0
        %1215 = vmatpush2.msra.mxu0 0.0
        %1216 = vmatprep.subr.mxu0 0.0
        %1217 = vmatpush2.msra.mxu0 0.0
        %1218 = vmatprep.subr.mxu0 0.0
        %1219 = vmatpush2.msra.mxu0 0.0
        %1220 = vmatprep.subr.mxu0 0.0
        %1221 = vmatpush2.msra.mxu0 0.0
        %1222 = vmatprep.subr.mxu0 0.0
        %1223 = vmatpush2.msra.mxu0 0.0
        %1224 = vmatprep.subr.mxu0 0.0
        %1225 = vmatpush2.msra.mxu0 0.0
        %1226 = vmatprep.subr.mxu0 0.0
        %1227 = vmatpush2.msra.mxu0 0.0
        %1228 = vmatprep.subr.mxu0 0.0
        %1229 = vmatpush2.msra.mxu0 0.0
        %1230 = vmatprep.subr.mxu0 0.0
        %1231 = vmatpush2.msra.mxu0 0.0
        %1232 = vmatprep.subr.mxu0 0.0
        %1233 = vmatpush2.msra.mxu0 0.0
        %1234 = vmatprep.mubr.f32.mxu0 0.0
        %1235 = vmatmul.mubr.f32.gmra.mxu0 %v1165
        %v1236 = vpop.f32.mrf.mxu0
        %v1237 = vadd.f32 %v1163, %v1236
        %v1238 = vpop.f32.mrf.mxu0
        %1239 = vmatprep.mubr.f32.mxu0 0.0
        %1240 = vmatmul.mubr.f32.gmra.mxu0 %v1168
        %v1241 = vpop.f32.mrf.mxu0
        %v1242 = vadd.f32 %v1163, %v1241
        %v1243 = vpop.f32.mrf.mxu0
        %1244 = vdwg.mxu0
        %1245 = vst [vmem:[#allocation2] sm:$0x3f] 0.0
        %1246 = vst [vmem:[#allocation2 + $0x8] sm:$0x3f] 0.0
        %1247 = vst [vmem:[#allocation2 + $0x10] sm:$0x3f] 0.0
        %1248 = vst [vmem:[#allocation2 + $0x18] sm:$0x3f] 0.0
        %1249 = vst [vmem:[#allocation2 + $0x20] sm:$0x3f] 0.0
        %1250 = vst [vmem:[#allocation2 + $0x28] sm:$0x3f] 0.0
        %s1251 = scalar_lea.vmem [#allocation2], 8
        %1252 = vst [vmem:[%s1251 + $0x1] sm:$0xf] %v1237
        %s1253 = scalar_lea.vmem [#allocation2], 16
        %1254 = vst [vmem:[%s1253 - $0x3] sm:$0xf0] %v1237
        %s1255 = scalar_lea.vmem [#allocation2], 24
        %1256 = vst [vmem:[%s1255 + $0x1] sm:$0xf] %v1242
        %s1257 = scalar_lea.vmem [#allocation2], 32
        %1258 = vst [vmem:[%s1257 - $0x3] sm:$0xf0] %v1242
        %v1259 = vld [vmem:[%s7] sm:$0xff]
        %v1260 = vld [vmem:[%s7 + $0x8] sm:$0x1]
        %v1261 = vld [vmem:[#allocation2] sm:$0xf]
        %v1262 = vlaneseq
        %v1263 = vshrl.u32 %v1262, 7
        %v1264 = vsub.s32 0, %v1263
        %v1265 = vrot.slane %v1259, %v1264
        %v1266 = vmul.f32 %v1261, %v1265
        %v1267 = vld [vmem:[#allocation2 + $0x1] sm:$0xf]
        %v1268 = vlaneseq
        %v1269 = vshrl.u32 %v1268, 7
        %v1270 = vsub.s32 1, %v1269
        %v1271 = vrot.slane %v1259, %v1270
        %v1272 = vmul.f32 %v1267, %v1271
        %v1273 = vadd.f32 %v1266, %v1272
        %v1274 = vld [vmem:[#allocation2 + $0x2] sm:$0xf]
        %v1275 = vlaneseq
        %v1276 = vshrl.u32 %v1275, 7
        %v1277 = vsub.s32 2, %v1276
        %v1278 = vrot.slane %v1259, %v1277
        %v1279 = vmul.f32 %v1274, %v1278
        %v1280 = vadd.f32 %v1273, %v1279
        %v1281 = vld [vmem:[%s1251] sm:$0xf]
        %v1282 = vlaneseq
        %v1283 = vshrl.u32 %v1282, 7
        %v1284 = vsub.s32 3, %v1283
        %v1285 = vrot.slane %v1259, %v1284
        %v1286 = vmul.f32 %v1281, %v1285
        %v1287 = vadd.f32 %v1280, %v1286
        %v1288 = vld [vmem:[%s1251 + $0x1] sm:$0xf]
        %v1289 = vlaneseq
        %v1290 = vshrl.u32 %v1289, 7
        %v1291 = vsub.s32 4, %v1290
        %v1292 = vrot.slane %v1259, %v1291
        %v1293 = vmul.f32 %v1288, %v1292
        %v1294 = vadd.f32 %v1287, %v1293
        %v1295 = vld [vmem:[%s1251 + $0x2] sm:$0xf]
        %v1296 = vlaneseq
        %v1297 = vshrl.u32 %v1296, 7
        %v1298 = vsub.s32 5, %v1297
        %v1299 = vrot.slane %v1259, %v1298
        %v1300 = vmul.f32 %v1295, %v1299
        %v1301 = vadd.f32 %v1294, %v1300
        %v1302 = vld [vmem:[%s1253] sm:$0xf]
        %v1303 = vlaneseq
        %v1304 = vshrl.u32 %v1303, 7
        %v1305 = vsub.s32 6, %v1304
        %v1306 = vrot.slane %v1259, %v1305
        %v1307 = vmul.f32 %v1302, %v1306
        %v1308 = vadd.f32 %v1301, %v1307
        %v1309 = vld [vmem:[%s1253 + $0x1] sm:$0xf]
        %v1310 = vlaneseq
        %v1311 = vshrl.u32 %v1310, 7
        %v1312 = vsub.s32 7, %v1311
        %v1313 = vrot.slane %v1259, %v1312
        %v1314 = vmul.f32 %v1309, %v1313
        %v1315 = vadd.f32 %v1308, %v1314
        %v1316 = vld [vmem:[%s1253 + $0x2] sm:$0xf]
        %v1317 = vlaneseq
        %v1318 = vshrl.u32 %v1317, 7
        %v1319 = vsub.s32 0, %v1318
        %v1320 = vrot.slane %v1260, %v1319
        %v1321 = vmul.f32 %v1316, %v1320
        %v1322 = vadd.f32 %v1315, %v1321
        %v1323 = vmul.f32 %v1281, %v1265
        %v1324 = vmul.f32 %v1288, %v1271
        %v1325 = vadd.f32 %v1323, %v1324
        %v1326 = vmul.f32 %v1295, %v1278
        %v1327 = vadd.f32 %v1325, %v1326
        %v1328 = vmul.f32 %v1302, %v1285
        %v1329 = vadd.f32 %v1327, %v1328
        %v1330 = vmul.f32 %v1309, %v1292
        %v1331 = vadd.f32 %v1329, %v1330
        %v1332 = vmul.f32 %v1316, %v1299
        %v1333 = vadd.f32 %v1331, %v1332
        %v1334 = vld [vmem:[%s1255] sm:$0xf]
        %v1335 = vmul.f32 %v1334, %v1306
        %v1336 = vadd.f32 %v1333, %v1335
        %v1337 = vld [vmem:[%s1255 + $0x1] sm:$0xf]
        %v1338 = vmul.f32 %v1337, %v1313
        %v1339 = vadd.f32 %v1336, %v1338
        %v1340 = vld [vmem:[%s1255 + $0x2] sm:$0xf]
        %v1341 = vmul.f32 %v1340, %v1320
        %v1342 = vadd.f32 %v1339, %v1341
        %v1343 = vmul.f32 %v1302, %v1265
        %v1344 = vmul.f32 %v1309, %v1271
        %v1345 = vadd.f32 %v1343, %v1344
        %v1346 = vmul.f32 %v1316, %v1278
        %v1347 = vadd.f32 %v1345, %v1346
        %v1348 = vmul.f32 %v1334, %v1285
        %v1349 = vadd.f32 %v1347, %v1348
        %v1350 = vmul.f32 %v1337, %v1292
        %v1351 = vadd.f32 %v1349, %v1350
        %v1352 = vmul.f32 %v1340, %v1299
        %v1353 = vadd.f32 %v1351, %v1352
        %v1354 = vld [vmem:[%s1257] sm:$0xf]
        %v1355 = vmul.f32 %v1354, %v1306
        %v1356 = vadd.f32 %v1353, %v1355
        %v1357 = vld [vmem:[%s1257 + $0x1] sm:$0xf]
        %v1358 = vmul.f32 %v1357, %v1313
        %v1359 = vadd.f32 %v1356, %v1358
        %v1360 = vld [vmem:[%s1257 + $0x2] sm:$0xf]
        %v1361 = vmul.f32 %v1360, %v1320
        %v1362 = vadd.f32 %v1359, %v1361
        %v1363 = vmul.f32 %v1334, %v1265
        %v1364 = vmul.f32 %v1337, %v1271
        %v1365 = vadd.f32 %v1363, %v1364
        %v1366 = vmul.f32 %v1340, %v1278
        %v1367 = vadd.f32 %v1365, %v1366
        %v1368 = vmul.f32 %v1354, %v1285
        %v1369 = vadd.f32 %v1367, %v1368
        %v1370 = vmul.f32 %v1357, %v1292
        %v1371 = vadd.f32 %v1369, %v1370
        %v1372 = vmul.f32 %v1360, %v1299
        %v1373 = vadd.f32 %v1371, %v1372
        %s1374 = scalar_lea.vmem [#allocation2], 40
        %v1375 = vld [vmem:[%s1374] sm:$0xf]
        %v1376 = vmul.f32 %v1375, %v1306
        %v1377 = vadd.f32 %v1373, %v1376
        %v1378 = vld [vmem:[%s1374 + $0x1] sm:$0xf]
        %v1379 = vmul.f32 %v1378, %v1313
        %v1380 = vadd.f32 %v1377, %v1379
        %v1381 = vld [vmem:[%s1374 + $0x2] sm:$0xf]
        %v1382 = vmul.f32 %v1381, %v1320
        %v1383 = vadd.f32 %v1380, %v1382
        %v1385 = vrot.slane %v1342, 4
        %v1388 = vrot.slane %v1383, 4
        %vm1390 = vcmask 1043456
        %v1391 = vsel %vm1390, %v1322, %v1385
        %v1392 = vsel %vm1390, %v1362, %v1388
        %v1393 = vlaneseq
        %v1394 = vshrl.u32 %v1393, 7
        %v1395 = vsub.s32 1, %v1394
        %v1396 = vrot.slane %v387, %v1395
        %v1397 = vadd.f32 %v1391, %v1396
        %v1398 = vadd.f32 %v1392, %v1396
        %v1399 = vmul.f32 %v1397, 0.5
        %v1400 = vmul.f32 %v1398, 0.5
        %v1401 = vmul.f32 %v1397, 0.044715
        %v1402 = vmul.f32 %v1398, 0.044715
        %v1403 = vmul.f32 %v1401, %v1397
        %v1404 = vmul.f32 %v1402, %v1398
        %v1405 = vmul.f32 %v1403, %v1397
        %v1406 = vmul.f32 %v1404, %v1398
        %v1407 = vadd.f32 %v1397, %v1405
        %v1408 = vadd.f32 %v1398, %v1406
        %v1409 = vmul.f32 %v1407, 0.7978846
        %v1410 = vmul.f32 %v1408, 0.7978846
        %v1411 = vtanh.pop %v1409
        %v1412 = vtanh.pop %v1410
        %v1413 = vadd.f32 %v1411, 1.0
        %v1414 = vadd.f32 %v1412, 1.0
        %v1415 = vmul.f32 %v1399, %v1413
        %v1416 = vmul.f32 %v1400, %v1414
        %v1417 = vld [vmem:[%s8] sm:$0xff]
        %v1418 = vld [vmem:[%s8 + $0x8] sm:$0xff]
        %v1419 = vld [vmem:[%s8 + $0x10] sm:$0xff]
        %v1420 = vld [vmem:[%s8 + $0x18] sm:$0xff]
        %v1421 = vld [vmem:[%s8 + $0x20] sm:$0xff]
        %v1422 = vld [vmem:[%s8 + $0x28] sm:$0xff]
        %v1423 = vld [vmem:[%s8 + $0x30] sm:$0xff]
        %v1424 = vld [vmem:[%s8 + $0x38] sm:$0xff]
        %v1425 = vld [vmem:[%s8 + $0x40] sm:$0xff]
        %v1426 = vld [vmem:[%s8 + $0x48] sm:$0xff]
        %v1427 = vld [vmem:[%s8 + $0x50] sm:$0xff]
        %v1428 = vld [vmem:[%s8 + $0x58] sm:$0xff]
        %v1429 = vld [vmem:[%s8 + $0x60] sm:$0xff]
        %v1430 = vld [vmem:[%s8 + $0x68] sm:$0xff]
        %v1431 = vld [vmem:[%s8 + $0x70] sm:$0xff]
        %v1432 = vld [vmem:[%s8 + $0x78] sm:$0xff]
        %v1433 = vlaneseq
        %v1434 = vshrl.u32 %v1433, 7
        %v1435 = vsub.s32 3, %v1434
        %v1436 = vrot.slane %v386, %v1435
        %1437 = vmatprep.subr.mxu0 0.0
        %1438 = vmatpush1.msra.mxu0 %v1432
        %1439 = vmatprep.subr.mxu0 0.0
        %1440 = vmatpush1.msra.mxu0 %v1431
        %1441 = vmatprep.subr.mxu0 0.0
        %1442 = vmatpush1.msra.mxu0 %v1430
        %1443 = vmatprep.subr.mxu0 0.0
        %1444 = vmatpush1.msra.mxu0 %v1429
        %1445 = vmatprep.subr.mxu0 0.0
        %1446 = vmatpush1.msra.mxu0 %v1428
        %1447 = vmatprep.subr.mxu0 0.0
        %1448 = vmatpush1.msra.mxu0 %v1427
        %1449 = vmatprep.subr.mxu0 0.0
        %1450 = vmatpush1.msra.mxu0 %v1426
        %1451 = vmatprep.subr.mxu0 0.0
        %1452 = vmatpush1.msra.mxu0 %v1425
        %1453 = vmatprep.subr.mxu0 0.0
        %1454 = vmatpush1.msra.mxu0 %v1424
        %1455 = vmatprep.subr.mxu0 0.0
        %1456 = vmatpush1.msra.mxu0 %v1423
        %1457 = vmatprep.subr.mxu0 0.0
        %1458 = vmatpush1.msra.mxu0 %v1422
        %1459 = vmatprep.subr.mxu0 0.0
        %1460 = vmatpush1.msra.mxu0 %v1421
        %1461 = vmatprep.subr.mxu0 0.0
        %1462 = vmatpush1.msra.mxu0 %v1420
        %1463 = vmatprep.subr.mxu0 0.0
        %1464 = vmatpush1.msra.mxu0 %v1419
        %1465 = vmatprep.subr.mxu0 0.0
        %1466 = vmatpush1.msra.mxu0 %v1418
        %1467 = vmatprep.subr.mxu0 0.0
        %1468 = vmatpush1.msra.mxu0 %v1417
        %1469 = vmatprep.subr.mxu0 0.0
        %1470 = vmatpush2.msra.mxu0 0.0
        %1471 = vmatprep.subr.mxu0 0.0
        %1472 = vmatpush2.msra.mxu0 0.0
        %1473 = vmatprep.subr.mxu0 0.0
        %1474 = vmatpush2.msra.mxu0 0.0
        %1475 = vmatprep.subr.mxu0 0.0
        %1476 = vmatpush2.msra.mxu0 0.0
        %1477 = vmatprep.subr.mxu0 0.0
        %1478 = vmatpush2.msra.mxu0 0.0
        %1479 = vmatprep.subr.mxu0 0.0
        %1480 = vmatpush2.msra.mxu0 0.0
        %1481 = vmatprep.subr.mxu0 0.0
        %1482 = vmatpush2.msra.mxu0 0.0
        %1483 = vmatprep.subr.mxu0 0.0
        %1484 = vmatpush2.msra.mxu0 0.0
        %1485 = vmatprep.subr.mxu0 0.0
        %1486 = vmatpush2.msra.mxu0 0.0
        %1487 = vmatprep.subr.mxu0 0.0
        %1488 = vmatpush2.msra.mxu0 0.0
        %1489 = vmatprep.subr.mxu0 0.0
        %1490 = vmatpush2.msra.mxu0 0.0
        %1491 = vmatprep.subr.mxu0 0.0
        %1492 = vmatpush2.msra.mxu0 0.0
        %1493 = vmatprep.subr.mxu0 0.0
        %1494 = vmatpush2.msra.mxu0 0.0
        %1495 = vmatprep.subr.mxu0 0.0
        %1496 = vmatpush2.msra.mxu0 0.0
        %1497 = vmatprep.subr.mxu0 0.0
        %1498 = vmatpush2.msra.mxu0 0.0
        %1499 = vmatprep.subr.mxu0 0.0
        %1500 = vmatpush2.msra.mxu0 0.0
        %1501 = vmatprep.mubr.f32.mxu0 0.0
        %1502 = vmatmul.mubr.f32.gmra.mxu0 %v1415
        %v1503 = vpop.f32.mrf.mxu0
        %v1504 = vadd.f32 %v1436, %v1503
        %v1505 = vpop.f32.mrf.mxu0
        %1506 = vmatprep.mubr.f32.mxu0 0.0
        %1507 = vmatmul.mubr.f32.gmra.mxu0 %v1416
        %v1508 = vpop.f32.mrf.mxu0
        %v1509 = vadd.f32 %v1436, %v1508
        %v1510 = vpop.f32.mrf.mxu0
        %1511 = vdwg.mxu0
        %v1512 = vadd.f32 %v1116, %v1504
        %v1513 = vadd.f32 %v1117, %v1509
        %v1514 = vsel %vm501, %v1512, 0.0
        %1515 = vadd.xlane.f32.xlu0 %v1514
        %v1516 = vpop.xlane.xlu0 %1515
        %v1517 = vsel %vm501, %v1513, 0.0
        %1518 = vadd.xlane.f32.xlu0 %v1517
        %v1519 = vpop.xlane.xlu0 %1518
        %v1520 = vmul.f32 %v1516, %v508
        %v1521 = vmul.f32 %v1519, %v508
        %v1522 = vsub.f32 %v1512, %v1520
        %v1523 = vsub.f32 %v1513, %v1521
        %v1524 = vmul.f32 %v1522, %v1522
        %v1525 = vmul.f32 %v1523, %v1523
        %v1526 = vsel %vm501, %v1524, 0.0
        %1527 = vadd.xlane.f32.xlu0 %v1526
        %v1528 = vpop.xlane.xlu0 %1527
        %v1529 = vsel %vm501, %v1525, 0.0
        %1530 = vadd.xlane.f32.xlu0 %v1529
        %v1531 = vpop.xlane.xlu0 %1530
        %v1532 = vmul.f32 %v1528, %v508
        %v1533 = vmul.f32 %v1531, %v508
        %v1534 = vadd.f32 %v1532, 1e-05
        %v1535 = vadd.f32 %v1533, 1e-05
        %v1536 = vrsqrt.pop %v1534
        %v1537 = vrsqrt.pop %v1535
        %v1538 = vmul.f32 %v1522, %v1536
        %v1539 = vmul.f32 %v1523, %v1537
        %v1540 = vlaneseq
        %v1541 = vshrl.u32 %v1540, 7
        %v1542 = vsub.s32 4, %v1541
        %v1543 = vrot.slane %v386, %v1542
        %v1544 = vmul.f32 %v1538, %v1543
        %v1545 = vmul.f32 %v1539, %v1543
        %v1546 = vlaneseq
        %v1547 = vshrl.u32 %v1546, 7
        %v1548 = vsub.s32 5, %v1547
        %v1549 = vrot.slane %v386, %v1548
        %v1550 = vadd.f32 %v1544, %v1549
        %v1551 = vadd.f32 %v1545, %v1549
        %1552 = vst.msk [vmem:[%s379] sm:$0xff] %vm501, %v1550
        %1553 = vst.msk [vmem:[%s379 + $0x8] sm:$0xff] %vm501, %v1551
        %s1554 = sand.u32 %s269, 1
        %s1555 = scalar_lea.sflag [#allocation4], %s1554
        %s1556 = sand.u32 %s269, 1
        %s1557 = smul.addr %s1556, 16
        %s1558 = scalar_lea.vmem [#allocation3], %s1557
        // Predicated region
        $region65: #{hfanvos_forward.1} parent=63 // pred_check
          %p1559 = pneg %p279
        $region66: #{hfanvos_forward.1} parent=63 // pred_check_branch
          %1561 = sbr.rel (%p1559) target = $region68
        $region67: #{hfanvos_forward.1} parent=63 // pred_region
          %s1563 = ssub.s32 256, 256
          %1564 = vsyncadd %s1555, %s1563
          %s1565 = smul.addr %s25, 2
          %s1566 = smul.addr %s1565, 128
          %s1567 = scalar_lea.hbm %s11, %s1566
          %s1568 = sshll.u32 %s1558, 4
          %s1569 = int_to_ptr.vmem [resolvable:$true] %s1568
          %1574 = dma.vmem_to_hbm [thread:$0]  %s1569, 256, %s1567, %s1555, 128, 128, 8
        $region68: #{hfanvos_forward.1} parent=63 // pred_fallthru
          _
      $region64: #{hfanvos_forward.1} parent=5 // pred_fallthru
        _
      %p1575 = scmp.le.s32.totalorder 2, %s20
      // Predicated region
      $region69: #{hfanvos_forward.1} parent=5 // pred_check
        %p1576 = pneg %p1575
      $region70: #{hfanvos_forward.1} parent=5 // pred_check_branch
        %1578 = sbr.rel (%p1576) target = $region72
      $region71: #{hfanvos_forward.1} parent=5 // pred_region
        %s1579 = ssub.s32 %s20, 2
        // Predicated region
        $region73: #{hfanvos_forward.1} parent=71 // pred_check
          %p1580 = pneg %p285
        $region74: #{hfanvos_forward.1} parent=71 // pred_check_branch
          %1582 = sbr.rel (%p1580) target = $region76
        $region75: #{hfanvos_forward.1} parent=71 // pred_region
          %s1583 = sand.u32 %s270, 1
          %s1584 = scalar_lea.sflag [#allocation4], %s1583
          %s1585 = sand.u32 %s270, 1
          %s1586 = smul.addr %s1585, 16
          %s1587 = scalar_lea.vmem [#allocation3], %s1586
          %1588 = dma.done %s1584, 256
        $region76: #{hfanvos_forward.1} parent=71 // pred_fallthru
          _
      $region72: #{hfanvos_forward.1} parent=5 // pred_fallthru
        _
    $region6: #{hfanvos_forward.1} parent=1 // loop_footer
      %s24 = sadd.s32 1, %s20
    $region7: #{hfanvos_forward.1} parent=1 // loop_footer_branch
      %19 = sbr.rel target = $region3
    $region8: #{hfanvos_forward.1} parent=1 // loop_exit
      _
    %1589 = vsyncpa [#allocation4], 1
    %s1590 = scalar_lea.sflag [#allocation4], 1
    %1591 = vsyncpa %s1590, 1

</llo_original>
